<compile_context>
chip_gen: v7x
topology: tpu7x:2x2x1
jax: 0.10.0
libtpu: 0.0.40
codegen_flags: <defaults>
</compile_context>

<pallas_src>
import functools
import math

import jax
import jax.numpy as jnp
from jax import lax
from jax.experimental import pallas as pl
from jax.experimental.pallas import tpu as pltpu


# ----------------------------------------------------------------------------
# Kernel: one grid step == one decode step; h/c carried in VMEM scratch.
# ----------------------------------------------------------------------------
def attn_decoder_decode_kernel(
    action_ref,       # (1, B, 1) int32   per-step action ids
    feature_ref,      # (1, B, F)         per-step features
    h0_ref,           # (B, H)            initial hidden state (used at t == 0)
    c0_ref,           # (B, H)            initial cell state   (used at t == 0)
    ctx_ref,          # (B, S, H)         resident across steps
    mask_ref,         # (B, S)            >0 means "mask out"; resident
    w_act_ref,        # (NA, 4H)          embedding @ W_ih[:, :E].T  (gates packed i|f|g|o)
    w_feat_ref,       # (F, 4H)           W_ih[:, E:].T
    w_h_ref,          # (H, 4H)           W_hh.T
    b_gates_ref,      # (1, 4H)           b_ih + b_hh
    w_in_t_ref,       # (H, H)            attention linear_in (no bias)
    w_out_ctx_t_ref,  # (H, H)            linear_out half applied to weighted context
    w_out_h_t_ref,    # (H, H)            linear_out half applied to h1
    w_dec_t_ref,      # (H, A)
    b_dec_ref,        # (1, A)
    h_out_ref,        # out (1, B, H)
    c_out_ref,        # out (1, B, H)
    alpha_out_ref,    # out (1, B, S)
    logit_out_ref,    # out (1, B, A)
    h_state,          # scratch (B, H) f32  -- hidden state carried across grid steps
    c_state,          # scratch (B, H) f32  -- cell state carried across grid steps
):
    t = pl.program_id(0)
    cdt = w_feat_ref.dtype                 # matmul operand dtype (f32 or bf16)
    B, H = h0_ref.shape
    NA = w_act_ref.shape[0]

    @pl.when(t == 0)
    def _():
        h_state[...] = h0_ref[...].astype(jnp.float32)
        c_state[...] = c0_ref[...].astype(jnp.float32)

    h0 = h_state[...]
    c0 = c_state[...]

    # ---- embedding via in-kernel one-hot matmul (embedding folded into W_act) ----
    act = action_ref[0]                                           # (B, 1) int32
    onehot = (act == lax.broadcasted_iota(jnp.int32, (B, NA), 1)).astype(cdt)
    feat = feature_ref[0]                                         # (B, F)

    # ---- LSTMCell gates (packed i|f|g|o), f32 accumulation, f32 epilogue ----
    gates = (
        jnp.dot(onehot, w_act_ref[...], preferred_element_type=jnp.float32)
        + jnp.dot(feat.astype(cdt), w_feat_ref[...], preferred_element_type=jnp.float32)
        + jnp.dot(h0.astype(cdt), w_h_ref[...], preferred_element_type=jnp.float32)
        + b_gates_ref[...].astype(jnp.float32)
    )                                                             # (B, 4H)
    i_g = jax.nn.sigmoid(gates[:, 0 * H:1 * H])
    f_g = jax.nn.sigmoid(gates[:, 1 * H:2 * H])
    g_g = jnp.tanh(gates[:, 2 * H:3 * H])
    o_g = jax.nn.sigmoid(gates[:, 3 * H:4 * H])
    c1 = f_g * c0 + i_g * g_g
    h1 = o_g * jnp.tanh(c1)
    h_state[...] = h1
    c_state[...] = c1

    # ---- SoftDotAttention ----------------------------------------------------
    target = jnp.dot(h1.astype(cdt), w_in_t_ref[...],
                     preferred_element_type=jnp.float32)          # (B, H)
    ctx = ctx_ref[...].astype(jnp.float32)                        # (B, S, H)
    attn = jnp.sum(ctx * target[:, None, :], axis=-1)             # (B, S)
    # Finite "minus infinity": underflows to exactly 0 after exp for partially
    # masked rows; avoids NaN if a row were ever fully masked.
    attn = jnp.where(mask_ref[...] > 0, -1e30, attn)

    m = jnp.max(attn, axis=-1, keepdims=True)
    e = jnp.exp(attn - m)
    denom = jnp.sum(e, axis=-1, keepdims=True)
    alpha = e / denom                                             # exact (S is tiny)
    weighted = jnp.sum(ctx * alpha[:, :, None], axis=1)           # (B, H)

    # Concat-free linear_out: tanh(weighted @ W_a + h1 @ W_b). (Re-fusing to a single
    # K=2H matmul only pays when H is a multiple of 128.)
    h_tilde = jnp.tanh(
        jnp.dot(weighted.astype(cdt), w_out_ctx_t_ref[...],
                preferred_element_type=jnp.float32)
        + jnp.dot(h1.astype(cdt), w_out_h_t_ref[...],
                  preferred_element_type=jnp.float32))

    logit = (jnp.dot(h_tilde.astype(cdt), w_dec_t_ref[...],
                     preferred_element_type=jnp.float32)
             + b_dec_ref[...].astype(jnp.float32))

    h_out_ref[0] = h1
    c_out_ref[0] = c1
    alpha_out_ref[0] = alpha
    logit_out_ref[0] = logit


# ----------------------------------------------------------------------------
# One-time parameter preprocessing (hoisted out of the per-step path)
# ----------------------------------------------------------------------------
def prepare_params(params, compute_dtype=jnp.float32):
    """Transpose to (in, out), fold biases, fold the embedding table into the gate
    weights, split linear_out. No layout padding: gates stay packed i|f|g|o.

    compute_dtype=jnp.bfloat16 halves weight DMA (MXU-native on v5e/v6e/v7x);
    accumulation and the elementwise epilogue stay f32 either way. Keep f32 for
    1e-3 parity tests against an f32 reference.
    """
    emb = params["embedding"]                       # (NA, E)
    w_ih, w_hh = params["w_ih"], params["w_hh"]     # (4H, E+F), (4H, H)
    b_ih, b_hh = params["b_ih"], params["b_hh"]
    w_in, w_out = params["w_in"], params["w_out"]   # (H, H), (H, 2H)
    w_dec, b_dec = params["w_dec"], params["b_dec"] # (A, H), (A,)

    E = emb.shape[1]
    H = w_hh.shape[1]
    w_e = w_ih[:, :E]                               # (4H, E)  -> folded into embedding
    w_f = w_ih[:, E:]                               # (4H, F)

    return {
        "w_act": (emb @ w_e.T).astype(compute_dtype),             # (NA, 4H)
        "w_feat_t": w_f.T.astype(compute_dtype),                  # (F, 4H)
        "w_h_t": w_hh.T.astype(compute_dtype),                    # (H, 4H)
        "b_gates": (b_ih + b_hh).reshape(1, -1).astype(jnp.float32),
        "w_in_t": w_in.T.astype(compute_dtype),                   # (H, H)
        "w_out_ctx_t": w_out[:, :H].T.astype(compute_dtype),      # (H, H)
        "w_out_h_t": w_out[:, H:].T.astype(compute_dtype),        # (H, H)
        "w_dec_t": w_dec.T.astype(compute_dtype),                 # (H, A)
        "b_dec": b_dec.reshape(1, -1).astype(jnp.float32),        # (1, A)
        "dims": dict(E=E, H=H, F=w_f.shape[1], A=w_dec.shape[0], NA=emb.shape[0]),
    }


# ----------------------------------------------------------------------------
# Fused T-step decode: one pallas_call, grid over T, weights/ctx resident.
# ----------------------------------------------------------------------------
def attn_decoder_lstm_decode(prepped, actions, features, h_0, c_0, ctx, ctx_mask=None):
    d = prepped["dims"]
    H, A, F, NA = d["H"], d["A"], d["F"], d["NA"]
    B, S = ctx.shape[0], ctx.shape[1]
    T = actions.shape[0]

    actions = actions.reshape(T, B, 1).astype(jnp.int32)
    features = features.reshape(T, B, F).astype(jnp.float32)
    h0 = h_0.astype(jnp.float32)
    c0 = c_0.astype(jnp.float32)
    ctx32 = ctx.astype(jnp.float32)
    mask = (jnp.zeros((B, S), jnp.float32) if ctx_mask is None
            else ctx_mask.astype(jnp.float32).reshape(B, S))

    weights = (prepped["w_act"], prepped["w_feat_t"], prepped["w_h_t"],
               prepped["b_gates"], prepped["w_in_t"], prepped["w_out_ctx_t"],
               prepped["w_out_h_t"], prepped["w_dec_t"], prepped["b_dec"])

    def resident(arr):
        # Constant block index across the T grid -> DMA'd once, stays in VMEM.
        nd = arr.ndim
        return pl.BlockSpec(arr.shape, lambda t, _nd=nd: (0,) * _nd)

    step3 = lambda t: (t, 0, 0)
    in_specs = ([pl.BlockSpec((1, B, 1), step3),          # actions (per step)
                 pl.BlockSpec((1, B, F), step3),          # features (per step)
                 resident(h0), resident(c0),
                 resident(ctx32), resident(mask)]
                + [resident(w) for w in weights])

    out_shape = (jax.ShapeDtypeStruct((T, B, H), jnp.float32),   # h_1 per step
                 jax.ShapeDtypeStruct((T, B, H), jnp.float32),   # c_1 per step
                 jax.ShapeDtypeStruct((T, B, S), jnp.float32),   # alpha per step
                 jax.ShapeDtypeStruct((T, B, A), jnp.float32))   # logit per step
    out_specs = (pl.BlockSpec((1, B, H), step3),
                 pl.BlockSpec((1, B, H), step3),
                 pl.BlockSpec((1, B, S), step3),
                 pl.BlockSpec((1, B, A), step3))

    G = 4 * H
    flops = T * (2 * B * (NA * G + F * G + H * G + 3 * H * H + H * A) + 4 * B * S * H)
    transc = T * B * (6 * H + S)
    fixed_ins = (h0, c0, ctx32, mask) + weights
    bytes_accessed = int(
        sum(a.size * a.dtype.itemsize for a in fixed_ins)
        + actions.size * 4 + features.size * 4
        + sum(math.prod(o.shape) * 4 for o in out_shape))

    return pl.pallas_call(
        attn_decoder_decode_kernel,
        out_shape=out_shape,
        grid=(T,),
        in_specs=in_specs,
        out_specs=out_specs,
        scratch_shapes=[pltpu.VMEM((B, H), jnp.float32),     # h carried across steps
                        pltpu.VMEM((B, H), jnp.float32)],    # c carried across steps
        compiler_params=pltpu.CompilerParams(
            dimension_semantics=("arbitrary",)),             # steps are sequential
        cost_estimate=pl.CostEstimate(flops=int(flops),
                                      transcendentals=int(transc),
                                      bytes_accessed=bytes_accessed),
    )(actions, features, h0, c0, ctx32, mask, *weights)


# ----------------------------------------------------------------------------
# Module-equivalent single step (AttnDecoderLSTM.forward) = T=1 specialization.
# ----------------------------------------------------------------------------
def attn_decoder_lstm_forward(prepped, action, feature, h_0, c_0, ctx, ctx_mask=None):
    h_all, c_all, a_all, l_all = attn_decoder_lstm_decode(
        prepped,
        action.reshape(1, action.shape[0], 1),
        feature[None, ...],
        h_0, c_0, ctx, ctx_mask)
    return h_all[0], c_all[0], a_all[0], l_all[0]


# ----------------------------------------------------------------------------
# Pure-JAX reference (mirrors the PyTorch module, eval-mode dropout)
# ----------------------------------------------------------------------------
def reference_forward(params, action, feature, h_0, c_0, ctx, ctx_mask):
    H = h_0.shape[-1]
    emb = jnp.take(params["embedding"], action[:, 0], axis=0)
    x = jnp.concatenate([emb, feature], axis=1)
    gates = (x @ params["w_ih"].T + params["b_ih"]
             + h_0 @ params["w_hh"].T + params["b_hh"])
    i_g = jax.nn.sigmoid(gates[:, 0:H])
    f_g = jax.nn.sigmoid(gates[:, H:2 * H])
    g_g = jnp.tanh(gates[:, 2 * H:3 * H])
    o_g = jax.nn.sigmoid(gates[:, 3 * H:4 * H])
    c1 = f_g * c_0 + i_g * g_g
    h1 = o_g * jnp.tanh(c1)
    target = h1 @ params["w_in"].T
    attn = jnp.einsum("bsd,bd->bs", ctx, target)
    if ctx_mask is not None:
        attn = jnp.where(ctx_mask > 0, -jnp.inf, attn)
    alpha = jax.nn.softmax(attn, axis=1)
    weighted = jnp.einsum("bs,bsd->bd", alpha, ctx)
    h_tilde = jnp.tanh(jnp.concatenate([weighted, h1], axis=1) @ params["w_out"].T)
    logit = h_tilde @ params["w_dec"].T + params["b_dec"]
    return h1, c1, alpha, logit


if __name__ == "__main__":
    # Small shapes consistent with the module.
    B, S, T = 8, 8, 4
    IN_ACTIONS, OUT_ACTIONS = 6, 6
    E, H, F = 32, 32, 64

    key = jax.random.PRNGKey(0)
    ks = jax.random.split(key, 20)

    params = {
        "embedding": jax.random.normal(ks[0], (IN_ACTIONS, E), jnp.float32) * 0.1,
        "w_ih": jax.random.normal(ks[1], (4 * H, E + F), jnp.float32) * 0.1,
        "w_hh": jax.random.normal(ks[2], (4 * H, H), jnp.float32) * 0.1,
        "b_ih": jax.random.normal(ks[3], (4 * H,), jnp.float32) * 0.1,
        "b_hh": jax.random.normal(ks[4], (4 * H,), jnp.float32) * 0.1,
        "w_in": jax.random.normal(ks[5], (H, H), jnp.float32) * 0.1,
        "w_out": jax.random.normal(ks[6], (H, 2 * H), jnp.float32) * 0.1,
        "w_dec": jax.random.normal(ks[7], (OUT_ACTIONS, H), jnp.float32) * 0.1,
        "b_dec": jax.random.normal(ks[8], (OUT_ACTIONS,), jnp.float32) * 0.1,
    }

    action = jax.random.randint(ks[9], (B, 1), 0, IN_ACTIONS, jnp.int32)
    feature = jax.random.normal(ks[10], (B, F), jnp.float32)
    h_0 = jax.random.normal(ks[11], (B, H), jnp.float32)
    c_0 = jax.random.normal(ks[12], (B, H), jnp.float32)
    ctx = jax.random.normal(ks[13], (B, S, H), jnp.float32)
    # Mask out the tail of each sequence (never the whole row).
    ctx_mask = jnp.broadcast_to(
        (jnp.arange(S)[None, :] >= (S - 2)).astype(jnp.float32), (B, S))

    # One-time weight prep (keep f32 for parity vs. the f32 reference; bf16 in prod).
    prepped = prepare_params(params, compute_dtype=jnp.float32)

    # ---- single step (module forward semantics) ----
    step = jax.jit(functools.partial(attn_decoder_lstm_forward, prepped))
    outs = jax.block_until_ready(step(action, feature, h_0, c_0, ctx, ctx_mask))
    refs = reference_forward(params, action, feature, h_0, c_0, ctx, ctx_mask)
    for o, r in zip(outs, refs):
        assert o.shape == r.shape and o.dtype == r.dtype
        assert jnp.allclose(o, r, atol=1e-3, rtol=1e-3), float(jnp.max(jnp.abs(o - r)))

    # ---- fused T-step decode (teacher-forced) vs. looping the reference ----
    actions_t = jax.random.randint(ks[14], (T, B, 1), 0, IN_ACTIONS, jnp.int32)
    features_t = jax.random.normal(ks[15], (T, B, F), jnp.float32)
    decode = jax.jit(functools.partial(attn_decoder_lstm_decode, prepped))
    h_all, c_all, a_all, l_all = jax.block_until_ready(
        decode(actions_t, features_t, h_0, c_0, ctx, ctx_mask))

    h_r, c_r = h_0, c_0
    for t in range(T):
        h_r, c_r, a_r, l_r = reference_forward(
            params, actions_t[t], features_t[t], h_r, c_r, ctx, ctx_mask)
        for o, r in ((h_all[t], h_r), (c_all[t], c_r), (a_all[t], a_r), (l_all[t], l_r)):
            assert o.shape == r.shape and o.dtype == r.dtype
            assert jnp.allclose(o, r, atol=2e-3, rtol=2e-3), float(jnp.max(jnp.abs(o - r)))

    print("KERNEL_OK")
</pallas_src>

<mosaic_0001>
module attributes {stable_mosaic.version = 11 : i64} {
  func.func @attn_decoder_decode_kernel(%arg0: i32, %arg1: memref<1x8x1xi32, #tpu.memory_space<vmem>>, %arg2: memref<1x8x64xf32, #tpu.memory_space<vmem>>, %arg3: memref<8x32xf32, #tpu.memory_space<vmem>>, %arg4: memref<8x32xf32, #tpu.memory_space<vmem>>, %arg5: memref<8x8x32xf32, #tpu.memory_space<vmem>>, %arg6: memref<8x8xf32, #tpu.memory_space<vmem>>, %arg7: memref<6x128xf32, #tpu.memory_space<vmem>>, %arg8: memref<64x128xf32, #tpu.memory_space<vmem>>, %arg9: memref<32x128xf32, #tpu.memory_space<vmem>>, %arg10: memref<1x128xf32, #tpu.memory_space<vmem>>, %arg11: memref<32x32xf32, #tpu.memory_space<vmem>>, %arg12: memref<32x32xf32, #tpu.memory_space<vmem>>, %arg13: memref<32x32xf32, #tpu.memory_space<vmem>>, %arg14: memref<32x6xf32, #tpu.memory_space<vmem>>, %arg15: memref<1x6xf32, #tpu.memory_space<vmem>>, %arg16: memref<1x8x32xf32, #tpu.memory_space<vmem>>, %arg17: memref<1x8x32xf32, #tpu.memory_space<vmem>>, %arg18: memref<1x8x8xf32, #tpu.memory_space<vmem>>, %arg19: memref<1x8x6xf32, #tpu.memory_space<vmem>>, %arg20: memref<8x32xf32, #tpu.memory_space<vmem>>, %arg21: memref<8x32xf32, #tpu.memory_space<vmem>>) attributes {dimension_semantics = [#tpu.dimension_semantics<arbitrary>], iteration_bounds = array<i64: 1>, scalar_prefetch = 0 : i64, scratch_operands = 2 : i64, tpu.core_type = #tpu.core_type<tc>, window_params = [{transform_indices = @transform_0, window_bounds = array<i64: 1, 8, 1>}, {transform_indices = @transform_1, window_bounds = array<i64: 1, 8, 64>}, {pipeline_mode = #tpu.pipeline_mode<synchronous>, transform_indices = @transform_2, window_bounds = array<i64: 8, 32>}, {pipeline_mode = #tpu.pipeline_mode<synchronous>, transform_indices = @transform_3, window_bounds = array<i64: 8, 32>}, {pipeline_mode = #tpu.pipeline_mode<synchronous>, transform_indices = @transform_4, window_bounds = array<i64: 8, 8, 32>}, {pipeline_mode = #tpu.pipeline_mode<synchronous>, transform_indices = @transform_5, window_bounds = array<i64: 8, 8>}, {pipeline_mode = #tpu.pipeline_mode<synchronous>, transform_indices = @transform_6, window_bounds = array<i64: 6, 128>}, {pipeline_mode = #tpu.pipeline_mode<synchronous>, transform_indices = @transform_7, window_bounds = array<i64: 64, 128>}, {pipeline_mode = #tpu.pipeline_mode<synchronous>, transform_indices = @transform_8, window_bounds = array<i64: 32, 128>}, {pipeline_mode = #tpu.pipeline_mode<synchronous>, transform_indices = @transform_9, window_bounds = array<i64: 1, 128>}, {pipeline_mode = #tpu.pipeline_mode<synchronous>, transform_indices = @transform_10, window_bounds = array<i64: 32, 32>}, {pipeline_mode = #tpu.pipeline_mode<synchronous>, transform_indices = @transform_11, window_bounds = array<i64: 32, 32>}, {pipeline_mode = #tpu.pipeline_mode<synchronous>, transform_indices = @transform_12, window_bounds = array<i64: 32, 32>}, {pipeline_mode = #tpu.pipeline_mode<synchronous>, transform_indices = @transform_13, window_bounds = array<i64: 32, 6>}, {pipeline_mode = #tpu.pipeline_mode<synchronous>, transform_indices = @transform_14, window_bounds = array<i64: 1, 6>}, {transform_indices = @transform_15, window_bounds = array<i64: 1, 8, 32>}, {transform_indices = @transform_16, window_bounds = array<i64: 1, 8, 32>}, {transform_indices = @transform_17, window_bounds = array<i64: 1, 8, 8>}, {transform_indices = @transform_18, window_bounds = array<i64: 1, 8, 6>}]} {
    %c0_i32 = arith.constant 0 : i32
    %0 = arith.cmpi eq, %arg0, %c0_i32 : i32
    %1 = arith.extui %0 : i1 to i32
    %c0_i32_0 = arith.constant 0 : i32
    %2 = arith.cmpi ne, %1, %c0_i32_0 : i32
    scf.if %2 {
      %c0_64 = arith.constant 0 : index
      %c0_65 = arith.constant 0 : index
      %100 = vector.load %arg3[%c0_64, %c0_65] : memref<8x32xf32, #tpu.memory_space<vmem>>, vector<8x32xf32>
      %c0_66 = arith.constant 0 : index
      %c0_67 = arith.constant 0 : index
      %101 = vector.load %arg20[%c0_66, %c0_67] : memref<8x32xf32, #tpu.memory_space<vmem>>, vector<8x32xf32>
      tpu.vector_store %arg20[%c0_66, %c0_67], %100 {strides = array<i32>} : memref<8x32xf32, #tpu.memory_space<vmem>>, vector<8x32xf32>,
      %c0_68 = arith.constant 0 : index
      %c0_69 = arith.constant 0 : index
      %102 = vector.load %arg4[%c0_68, %c0_69] : memref<8x32xf32, #tpu.memory_space<vmem>>, vector<8x32xf32>
      %c0_70 = arith.constant 0 : index
      %c0_71 = arith.constant 0 : index
      %103 = vector.load %arg21[%c0_70, %c0_71] : memref<8x32xf32, #tpu.memory_space<vmem>>, vector<8x32xf32>
      tpu.vector_store %arg21[%c0_70, %c0_71], %102 {strides = array<i32>} : memref<8x32xf32, #tpu.memory_space<vmem>>, vector<8x32xf32>,
    } else {
    }
    %c0 = arith.constant 0 : index
    %c0_1 = arith.constant 0 : index
    %3 = vector.load %arg20[%c0, %c0_1] : memref<8x32xf32, #tpu.memory_space<vmem>>, vector<8x32xf32>
    %c0_2 = arith.constant 0 : index
    %c0_3 = arith.constant 0 : index
    %4 = vector.load %arg21[%c0_2, %c0_3] : memref<8x32xf32, #tpu.memory_space<vmem>>, vector<8x32xf32>
    %c0_4 = arith.constant 0 : index
    %c0_5 = arith.constant 0 : index
    %c0_6 = arith.constant 0 : index
    %5 = vector.load %arg1[%c0_4, %c0_5, %c0_6] : memref<1x8x1xi32, #tpu.memory_space<vmem>>, vector<1x8x1xi32>
    %6 = vector.shape_cast %5 : vector<1x8x1xi32> to vector<8x1xi32>
    %7 = tpu.iota {dimensions = array<i32: 1>} : vector<8x6xi32>
    %8 = vector.broadcast %6 : vector<8x1xi32> to vector<8x6xi32>
    %9 = arith.cmpi eq, %8, %7 : vector<8x6xi32>
    %10 = arith.extui %9 : vector<8x6xi1> to vector<8x6xi32>
    %11 = arith.sitofp %10 : vector<8x6xi32> to vector<8x6xf32>
    %c0_7 = arith.constant 0 : index
    %c0_8 = arith.constant 0 : index
    %c0_9 = arith.constant 0 : index
    %12 = vector.load %arg2[%c0_7, %c0_8, %c0_9] : memref<1x8x64xf32, #tpu.memory_space<vmem>>, vector<1x8x64xf32>
    %13 = vector.shape_cast %12 : vector<1x8x64xf32> to vector<8x64xf32>
    %c0_10 = arith.constant 0 : index
    %c0_11 = arith.constant 0 : index
    %14 = vector.load %arg7[%c0_10, %c0_11] : memref<6x128xf32, #tpu.memory_space<vmem>>, vector<6x128xf32>
    %cst = arith.constant dense<0.000000e+00> : vector<8x128xf32>
    %15 = tpu.matmul %11, %14, %cst {dimension_numbers = #tpu.dot_dimension_numbers<[1], [0], [0], [1], [0, 0, 1, 1], [], []>} : vector<8x6xf32>, vector<6x128xf32>, vector<8x128xf32> -> vector<8x128xf32>
    %c0_12 = arith.constant 0 : index
    %c0_13 = arith.constant 0 : index
    %16 = vector.load %arg8[%c0_12, %c0_13] : memref<64x128xf32, #tpu.memory_space<vmem>>, vector<64x128xf32>
    %cst_14 = arith.constant dense<0.000000e+00> : vector<8x128xf32>
    %17 = tpu.matmul %13, %16, %cst_14 {dimension_numbers = #tpu.dot_dimension_numbers<[1], [0], [0], [1], [0, 0, 1, 1], [], []>} : vector<8x64xf32>, vector<64x128xf32>, vector<8x128xf32> -> vector<8x128xf32>
    %18 = arith.addf %15, %17 : vector<8x128xf32>
    %c0_15 = arith.constant 0 : index
    %c0_16 = arith.constant 0 : index
    %19 = vector.load %arg9[%c0_15, %c0_16] : memref<32x128xf32, #tpu.memory_space<vmem>>, vector<32x128xf32>
    %cst_17 = arith.constant dense<0.000000e+00> : vector<8x128xf32>
    %20 = tpu.matmul %3, %19, %cst_17 {dimension_numbers = #tpu.dot_dimension_numbers<[1], [0], [0], [1], [0, 0, 1, 1], [], []>} : vector<8x32xf32>, vector<32x128xf32>, vector<8x128xf32> -> vector<8x128xf32>
    %21 = arith.addf %18, %20 : vector<8x128xf32>
    %c0_18 = arith.constant 0 : index
    %c0_19 = arith.constant 0 : index
    %22 = vector.load %arg10[%c0_18, %c0_19] : memref<1x128xf32, #tpu.memory_space<vmem>>, vector<1x128xf32>
    %23 = vector.broadcast %22 : vector<1x128xf32> to vector<8x128xf32>
    %24 = arith.addf %21, %23 : vector<8x128xf32>
    %25 = vector.extract_strided_slice %24 {offsets = [0, 0], sizes = [8, 32], strides = [1, 1]} : vector<8x128xf32> to vector<8x32xf32>
    %26 = arith.negf %25 : vector<8x32xf32>
    %27 = math.exp %26 : vector<8x32xf32>
    %cst_20 = arith.constant 1.000000e+00 : f32
    %28 = vector.broadcast %cst_20 : f32 to vector<8x32xf32>
    %29 = arith.addf %28, %27 : vector<8x32xf32>
    %30 = arith.divf %28, %29 : vector<8x32xf32>
    %31 = vector.extract_strided_slice %24 {offsets = [0, 32], sizes = [8, 32], strides = [1, 1]} : vector<8x128xf32> to vector<8x32xf32>
    %32 = arith.negf %31 : vector<8x32xf32>
    %33 = math.exp %32 : vector<8x32xf32>
    %cst_21 = arith.constant 1.000000e+00 : f32
    %34 = vector.broadcast %cst_21 : f32 to vector<8x32xf32>
    %35 = arith.addf %34, %33 : vector<8x32xf32>
    %36 = arith.divf %34, %35 : vector<8x32xf32>
    %37 = vector.extract_strided_slice %24 {offsets = [0, 64], sizes = [8, 32], strides = [1, 1]} : vector<8x128xf32> to vector<8x32xf32>
    %38 = math.tanh %37 : vector<8x32xf32>
    %39 = vector.extract_strided_slice %24 {offsets = [0, 96], sizes = [8, 32], strides = [1, 1]} : vector<8x128xf32> to vector<8x32xf32>
    %40 = arith.negf %39 : vector<8x32xf32>
    %41 = math.exp %40 : vector<8x32xf32>
    %cst_22 = arith.constant 1.000000e+00 : f32
    %42 = vector.broadcast %cst_22 : f32 to vector<8x32xf32>
    %43 = arith.addf %42, %41 : vector<8x32xf32>
    %44 = arith.divf %42, %43 : vector<8x32xf32>
    %45 = arith.mulf %36, %4 : vector<8x32xf32>
    %46 = arith.mulf %30, %38 : vector<8x32xf32>
    %47 = arith.addf %45, %46 : vector<8x32xf32>
    %48 = math.tanh %47 : vector<8x32xf32>
    %49 = arith.mulf %44, %48 : vector<8x32xf32>
    %c0_23 = arith.constant 0 : index
    %c0_24 = arith.constant 0 : index
    %50 = vector.load %arg20[%c0_23, %c0_24] : memref<8x32xf32, #tpu.memory_space<vmem>>, vector<8x32xf32>
    tpu.vector_store %arg20[%c0_23, %c0_24], %49 {strides = array<i32>} : memref<8x32xf32, #tpu.memory_space<vmem>>, vector<8x32xf32>,
    %c0_25 = arith.constant 0 : index
    %c0_26 = arith.constant 0 : index
    %51 = vector.load %arg21[%c0_25, %c0_26] : memref<8x32xf32, #tpu.memory_space<vmem>>, vector<8x32xf32>
    tpu.vector_store %arg21[%c0_25, %c0_26], %47 {strides = array<i32>} : memref<8x32xf32, #tpu.memory_space<vmem>>, vector<8x32xf32>,
    %c0_27 = arith.constant 0 : index
    %c0_28 = arith.constant 0 : index
    %52 = vector.load %arg11[%c0_27, %c0_28] : memref<32x32xf32, #tpu.memory_space<vmem>>, vector<32x32xf32>
    %cst_29 = arith.constant dense<0.000000e+00> : vector<8x32xf32>
    %53 = tpu.matmul %49, %52, %cst_29 {dimension_numbers = #tpu.dot_dimension_numbers<[1], [0], [0], [1], [0, 0, 1, 1], [], []>} : vector<8x32xf32>, vector<32x32xf32>, vector<8x32xf32> -> vector<8x32xf32>
    %c0_30 = arith.constant 0 : index
    %c0_31 = arith.constant 0 : index
    %c0_32 = arith.constant 0 : index
    %54 = vector.load %arg5[%c0_30, %c0_31, %c0_32] : memref<8x8x32xf32, #tpu.memory_space<vmem>>, vector<8x8x32xf32>
    %55 = vector.shape_cast %53 : vector<8x32xf32> to vector<8x1x32xf32>
    %56 = vector.broadcast %55 : vector<8x1x32xf32> to vector<8x8x32xf32>
    %57 = arith.mulf %54, %56 : vector<8x8x32xf32>
    %cst_33 = arith.constant dense<0.000000e+00> : vector<8x8xf32>
    %58 = vector.multi_reduction <add>, %57, %cst_33 [2] : vector<8x8x32xf32> to vector<8x8xf32>
    %c0_34 = arith.constant 0 : index
    %c0_35 = arith.constant 0 : index
    %59 = vector.load %arg6[%c0_34, %c0_35] : memref<8x8xf32, #tpu.memory_space<vmem>>, vector<8x8xf32>
    %cst_36 = arith.constant 0.000000e+00 : f32
    %60 = vector.broadcast %cst_36 : f32 to vector<8x8xf32>
    %61 = arith.cmpf ogt, %59, %60 : vector<8x8xf32>
    %cst_37 = arith.constant -1.000000e+30 : f32
    %62 = vector.broadcast %cst_37 : f32 to vector<8x8xf32>
    %63 = arith.select %61, %62, %58 : vector<8x8xi1>, vector<8x8xf32>
    %cst_38 = arith.constant dense<0xFF800000> : vector<8xf32>
    %64 = vector.multi_reduction <maximumf>, %63, %cst_38 [1] : vector<8x8xf32> to vector<8xf32>
    %65 = vector.shape_cast %64 : vector<8xf32> to vector<8x1xf32>
    %66 = vector.broadcast %65 : vector<8x1xf32> to vector<8x8xf32>
    %67 = arith.subf %63, %66 : vector<8x8xf32>
    %68 = math.exp %67 : vector<8x8xf32>
    %cst_39 = arith.constant dense<0.000000e+00> : vector<8xf32>
    %69 = vector.multi_reduction <add>, %68, %cst_39 [1] : vector<8x8xf32> to vector<8xf32>
    %70 = vector.shape_cast %69 : vector<8xf32> to vector<8x1xf32>
    %71 = vector.broadcast %70 : vector<8x1xf32> to vector<8x8xf32>
    %72 = arith.divf %68, %71 : vector<8x8xf32>
    %73 = vector.shape_cast %72 : vector<8x8xf32> to vector<8x8x1xf32>
    %74 = vector.broadcast %73 : vector<8x8x1xf32> to vector<8x8x32xf32>
    %75 = arith.mulf %54, %74 : vector<8x8x32xf32>
    %cst_40 = arith.constant dense<0.000000e+00> : vector<8x32xf32>
    %76 = vector.multi_reduction <add>, %75, %cst_40 [1] : vector<8x8x32xf32> to vector<8x32xf32>
    %c0_41 = arith.constant 0 : index
    %c0_42 = arith.constant 0 : index
    %77 = vector.load %arg12[%c0_41, %c0_42] : memref<32x32xf32, #tpu.memory_space<vmem>>, vector<32x32xf32>
    %cst_43 = arith.constant dense<0.000000e+00> : vector<8x32xf32>
    %78 = tpu.matmul %76, %77, %cst_43 {dimension_numbers = #tpu.dot_dimension_numbers<[1], [0], [0], [1], [0, 0, 1, 1], [], []>} : vector<8x32xf32>, vector<32x32xf32>, vector<8x32xf32> -> vector<8x32xf32>
    %c0_44 = arith.constant 0 : index
    %c0_45 = arith.constant 0 : index
    %79 = vector.load %arg13[%c0_44, %c0_45] : memref<32x32xf32, #tpu.memory_space<vmem>>, vector<32x32xf32>
    %cst_46 = arith.constant dense<0.000000e+00> : vector<8x32xf32>
    %80 = tpu.matmul %49, %79, %cst_46 {dimension_numbers = #tpu.dot_dimension_numbers<[1], [0], [0], [1], [0, 0, 1, 1], [], []>} : vector<8x32xf32>, vector<32x32xf32>, vector<8x32xf32> -> vector<8x32xf32>
    %81 = arith.addf %78, %80 : vector<8x32xf32>
    %82 = math.tanh %81 : vector<8x32xf32>
    %c0_47 = arith.constant 0 : index
    %c0_48 = arith.constant 0 : index
    %83 = vector.load %arg14[%c0_47, %c0_48] : memref<32x6xf32, #tpu.memory_space<vmem>>, vector<32x6xf32>
    %cst_49 = arith.constant dense<0.000000e+00> : vector<8x6xf32>
    %84 = tpu.matmul %82, %83, %cst_49 {dimension_numbers = #tpu.dot_dimension_numbers<[1], [0], [0], [1], [0, 0, 1, 1], [], []>} : vector<8x32xf32>, vector<32x6xf32>, vector<8x6xf32> -> vector<8x6xf32>
    %c0_50 = arith.constant 0 : index
    %c0_51 = arith.constant 0 : index
    %85 = vector.load %arg15[%c0_50, %c0_51] : memref<1x6xf32, #tpu.memory_space<vmem>>, vector<1x6xf32>
    %86 = vector.broadcast %85 : vector<1x6xf32> to vector<8x6xf32>
    %87 = arith.addf %84, %86 : vector<8x6xf32>
    %c0_52 = arith.constant 0 : index
    %c0_53 = arith.constant 0 : index
    %c0_54 = arith.constant 0 : index
    %88 = vector.load %arg16[%c0_52, %c0_53, %c0_54] : memref<1x8x32xf32, #tpu.memory_space<vmem>>, vector<1x8x32xf32>
    %89 = vector.shape_cast %88 : vector<1x8x32xf32> to vector<8x32xf32>
    %90 = vector.shape_cast %49 : vector<8x32xf32> to vector<1x8x32xf32>
    tpu.vector_store %arg16[%c0_52, %c0_53, %c0_54], %90 {strides = array<i32>} : memref<1x8x32xf32, #tpu.memory_space<vmem>>, vector<1x8x32xf32>,
    %c0_55 = arith.constant 0 : index
    %c0_56 = arith.constant 0 : index
    %c0_57 = arith.constant 0 : index
    %91 = vector.load %arg17[%c0_55, %c0_56, %c0_57] : memref<1x8x32xf32, #tpu.memory_space<vmem>>, vector<1x8x32xf32>
    %92 = vector.shape_cast %91 : vector<1x8x32xf32> to vector<8x32xf32>
    %93 = vector.shape_cast %47 : vector<8x32xf32> to vector<1x8x32xf32>
    tpu.vector_store %arg17[%c0_55, %c0_56, %c0_57], %93 {strides = array<i32>} : memref<1x8x32xf32, #tpu.memory_space<vmem>>, vector<1x8x32xf32>,
    %c0_58 = arith.constant 0 : index
    %c0_59 = arith.constant 0 : index
    %c0_60 = arith.constant 0 : index
    %94 = vector.load %arg18[%c0_58, %c0_59, %c0_60] : memref<1x8x8xf32, #tpu.memory_space<vmem>>, vector<1x8x8xf32>
    %95 = vector.shape_cast %94 : vector<1x8x8xf32> to vector<8x8xf32>
    %96 = vector.shape_cast %72 : vector<8x8xf32> to vector<1x8x8xf32>
    tpu.vector_store %arg18[%c0_58, %c0_59, %c0_60], %96 {strides = array<i32>} : memref<1x8x8xf32, #tpu.memory_space<vmem>>, vector<1x8x8xf32>,
    %c0_61 = arith.constant 0 : index
    %c0_62 = arith.constant 0 : index
    %c0_63 = arith.constant 0 : index
    %97 = vector.load %arg19[%c0_61, %c0_62, %c0_63] : memref<1x8x6xf32, #tpu.memory_space<vmem>>, vector<1x8x6xf32>
    %98 = vector.shape_cast %97 : vector<1x8x6xf32> to vector<8x6xf32>
    %99 = vector.shape_cast %87 : vector<8x6xf32> to vector<1x8x6xf32>
    tpu.vector_store %arg19[%c0_61, %c0_62, %c0_63], %99 {strides = array<i32>} : memref<1x8x6xf32, #tpu.memory_space<vmem>>, vector<1x8x6xf32>,
    return
  }
  func.func @transform_0(%arg0: i32) -> (i32, i32, i32) {
    %c0_i32 = arith.constant 0 : i32
    %c0_i32_0 = arith.constant 0 : i32
    %c0_i32_1 = arith.constant 0 : i32
    return %arg0, %c0_i32, %c0_i32_0 : i32, i32, i32
  }
  func.func @transform_1(%arg0: i32) -> (i32, i32, i32) {
    %c0_i32 = arith.constant 0 : i32
    %c0_i32_0 = arith.constant 0 : i32
    %c0_i32_1 = arith.constant 0 : i32
    return %arg0, %c0_i32, %c0_i32_0 : i32, i32, i32
  }
  func.func @transform_2(%arg0: i32) -> (i32, i32) {
    %c0_i32 = arith.constant 0 : i32
    %c0_i32_0 = arith.constant 0 : i32
    %c0_i32_1 = arith.constant 0 : i32
    return %c0_i32, %c0_i32_0 : i32, i32
  }
  func.func @transform_3(%arg0: i32) -> (i32, i32) {
    %c0_i32 = arith.constant 0 : i32
    %c0_i32_0 = arith.constant 0 : i32
    %c0_i32_1 = arith.constant 0 : i32
    return %c0_i32, %c0_i32_0 : i32, i32
  }
  func.func @transform_4(%arg0: i32) -> (i32, i32, i32) {
    %c0_i32 = arith.constant 0 : i32
    %c0_i32_0 = arith.constant 0 : i32
    %c0_i32_1 = arith.constant 0 : i32
    %c0_i32_2 = arith.constant 0 : i32
    return %c0_i32, %c0_i32_0, %c0_i32_1 : i32, i32, i32
  }
  func.func @transform_5(%arg0: i32) -> (i32, i32) {
    %c0_i32 = arith.constant 0 : i32
    %c0_i32_0 = arith.constant 0 : i32
    %c0_i32_1 = arith.constant 0 : i32
    return %c0_i32, %c0_i32_0 : i32, i32
  }
  func.func @transform_6(%arg0: i32) -> (i32, i32) {
    %c0_i32 = arith.constant 0 : i32
    %c0_i32_0 = arith.constant 0 : i32
    %c0_i32_1 = arith.constant 0 : i32
    return %c0_i32, %c0_i32_0 : i32, i32
  }
  func.func @transform_7(%arg0: i32) -> (i32, i32) {
    %c0_i32 = arith.constant 0 : i32
    %c0_i32_0 = arith.constant 0 : i32
    %c0_i32_1 = arith.constant 0 : i32
    return %c0_i32, %c0_i32_0 : i32, i32
  }
  func.func @transform_8(%arg0: i32) -> (i32, i32) {
    %c0_i32 = arith.constant 0 : i32
    %c0_i32_0 = arith.constant 0 : i32
    %c0_i32_1 = arith.constant 0 : i32
    return %c0_i32, %c0_i32_0 : i32, i32
  }
  func.func @transform_9(%arg0: i32) -> (i32, i32) {
    %c0_i32 = arith.constant 0 : i32
    %c0_i32_0 = arith.constant 0 : i32
    %c0_i32_1 = arith.constant 0 : i32
    return %c0_i32, %c0_i32_0 : i32, i32
  }
  func.func @transform_10(%arg0: i32) -> (i32, i32) {
    %c0_i32 = arith.constant 0 : i32
    %c0_i32_0 = arith.constant 0 : i32
    %c0_i32_1 = arith.constant 0 : i32
    return %c0_i32, %c0_i32_0 : i32, i32
  }
  func.func @transform_11(%arg0: i32) -> (i32, i32) {
    %c0_i32 = arith.constant 0 : i32
    %c0_i32_0 = arith.constant 0 : i32
    %c0_i32_1 = arith.constant 0 : i32
    return %c0_i32, %c0_i32_0 : i32, i32
  }
  func.func @transform_12(%arg0: i32) -> (i32, i32) {
    %c0_i32 = arith.constant 0 : i32
    %c0_i32_0 = arith.constant 0 : i32
    %c0_i32_1 = arith.constant 0 : i32
    return %c0_i32, %c0_i32_0 : i32, i32
  }
  func.func @transform_13(%arg0: i32) -> (i32, i32) {
    %c0_i32 = arith.constant 0 : i32
    %c0_i32_0 = arith.constant 0 : i32
    %c0_i32_1 = arith.constant 0 : i32
    return %c0_i32, %c0_i32_0 : i32, i32
  }
  func.func @transform_14(%arg0: i32) -> (i32, i32) {
    %c0_i32 = arith.constant 0 : i32
    %c0_i32_0 = arith.constant 0 : i32
    %c0_i32_1 = arith.constant 0 : i32
    return %c0_i32, %c0_i32_0 : i32, i32
  }
  func.func @transform_15(%arg0: i32) -> (i32, i32, i32) {
    %c0_i32 = arith.constant 0 : i32
    %c0_i32_0 = arith.constant 0 : i32
    %c0_i32_1 = arith.constant 0 : i32
    return %arg0, %c0_i32, %c0_i32_0 : i32, i32, i32
  }
  func.func @transform_16(%arg0: i32) -> (i32, i32, i32) {
    %c0_i32 = arith.constant 0 : i32
    %c0_i32_0 = arith.constant 0 : i32
    %c0_i32_1 = arith.constant 0 : i32
    return %arg0, %c0_i32, %c0_i32_0 : i32, i32, i32
  }
  func.func @transform_17(%arg0: i32) -> (i32, i32, i32) {
    %c0_i32 = arith.constant 0 : i32
    %c0_i32_0 = arith.constant 0 : i32
    %c0_i32_1 = arith.constant 0 : i32
    return %arg0, %c0_i32, %c0_i32_0 : i32, i32, i32
  }
  func.func @transform_18(%arg0: i32) -> (i32, i32, i32) {
    %c0_i32 = arith.constant 0 : i32
    %c0_i32_0 = arith.constant 0 : i32
    %c0_i32_1 = arith.constant 0 : i32
    return %arg0, %c0_i32, %c0_i32_0 : i32, i32, i32
  }
}

</mosaic_0001>

<llo_original>
// kernel: attn_decoder_lstm_forward.1
$region0: #{attn_decoder_lstm_forward.1}
  #allocation0 [shape = 'u32[]', space=smem, size = 0x4, offset = 0x4, fixed_abs, tag = 'smem constant byte address 0x4 - core index']
  #allocation1 [shape = 'u32[144,128]{1,0:T(1,128)}', space=vmem, size = 0x12000, scoped, tag = 'internal scratch']
  #allocation2 [shape = 'f32[8,32]{1,0:T(8,128)}', space=vmem, size = 0x1000, scoped, tag = 'scratch operand']
  #allocation3 [shape = 'f32[8,32]{1,0:T(8,128)}', space=vmem, size = 0x1000, scoped, tag = 'scratch operand']
  %s0 = inlined_call_operand.vmem [shape: s32[1,8,1], index: 0, kind: input, shape index: {}]
  %s1 = inlined_call_operand.hbm [shape: f32[1,8,64], index: 1, kind: input, shape index: {}]
  %s2 = inlined_call_operand.hbm [shape: f32[8,32], index: 2, kind: input, shape index: {}]
  %s3 = inlined_call_operand.hbm [shape: f32[8,32], index: 3, kind: input, shape index: {}]
  %s4 = inlined_call_operand.hbm [shape: f32[8,8,32], index: 4, kind: input, shape index: {}]
  %s5 = inlined_call_operand.hbm [shape: f32[8,8], index: 5, kind: input, shape index: {}]
  %s6 = inlined_call_operand.hbm [shape: f32[6,128], index: 6, kind: input, shape index: {}]
  %s7 = inlined_call_operand.hbm [shape: f32[64,128], index: 7, kind: input, shape index: {}]
  %s8 = inlined_call_operand.hbm [shape: f32[32,128], index: 8, kind: input, shape index: {}]
  %s9 = inlined_call_operand.hbm [shape: f32[1,128], index: 9, kind: input, shape index: {}]
  %s10 = inlined_call_operand.hbm [shape: f32[32,32], index: 10, kind: input, shape index: {}]
  %s11 = inlined_call_operand.hbm [shape: f32[32,32], index: 11, kind: input, shape index: {}]
  %s12 = inlined_call_operand.vmem [shape: f32[32,32], index: 12, kind: input, shape index: {}]
  %s13 = inlined_call_operand.vmem [shape: f32[32,6], index: 13, kind: input, shape index: {}]
  %s14 = inlined_call_operand.vmem [shape: f32[1,6], index: 14, kind: input, shape index: {}]
  %s15 = inlined_call_operand.hbm [shape: f32[1,8,32], index: 15, kind: output, shape index: {0}]
  %s16 = inlined_call_operand.hbm [shape: f32[1,8,32], index: 16, kind: output, shape index: {1}]
  %s17 = inlined_call_operand.hbm [shape: f32[1,8,8], index: 17, kind: output, shape index: {2}]
  %s18 = inlined_call_operand.hbm [shape: f32[1,8,6], index: 18, kind: output, shape index: {3}]
  %19 = xla_tuple %s15, %s16, %s17, %s18
  %s20 = sld [smem:[#allocation0]]
  $region142: #{attn_decoder_lstm_forward.1} parent=0
    _
  %s22 = ssub.s32 1, %s20
  %s23 = scalar_select 0, %s22, %s20
  $region1: #{attn_decoder_lstm_forward.1} parent=0
    #allocation4 [shape = 'u8[4096]{0}', space=vmem, size = 0x1000, scoped, tag = 'input window, operand 1, single buffered']
    #allocation5 [shape = 's32[1]{0}', space=sflag, size = 0x4, scoped, tag = 'scoped memory for attn_decoder_lstm_forward.1']
    #allocation6 [shape = 's32[1]{0}', space=sflag, size = 0x4, scoped, tag = 'scoped memory for attn_decoder_lstm_forward.1']
    #allocation7 [shape = 'u8[4096]{0}', space=vmem, size = 0x1000, scoped, tag = 'input window, operand 2, single buffered']
    #allocation8 [shape = 's32[1]{0}', space=sflag, size = 0x4, scoped, tag = 'scoped memory for attn_decoder_lstm_forward.1']
    #allocation9 [shape = 'u8[4096]{0}', space=vmem, size = 0x1000, scoped, tag = 'input window, operand 3, single buffered']
    #allocation10 [shape = 'u8[32768]{0}', space=vmem, size = 0x8000, scoped, tag = 'input window, operand 4, single buffered']
    #allocation11 [shape = 's32[1]{0}', space=sflag, size = 0x4, scoped, tag = 'scoped memory for attn_decoder_lstm_forward.1']
    #allocation12 [shape = 'u8[4096]{0}', space=vmem, size = 0x1000, scoped, tag = 'input window, operand 5, single buffered']
    #allocation13 [shape = 'u8[4096]{0}', space=vmem, size = 0x1000, scoped, tag = 'input window, operand 6, single buffered']
    #allocation14 [shape = 's32[1]{0}', space=sflag, size = 0x4, scoped, tag = 'scoped memory for attn_decoder_lstm_forward.1']
    #allocation15 [shape = 'u8[32768]{0}', space=vmem, size = 0x8000, scoped, tag = 'input window, operand 7, single buffered']
    #allocation16 [shape = 'u8[16384]{0}', space=vmem, size = 0x4000, scoped, tag = 'input window, operand 8, single buffered']
    #allocation17 [shape = 's32[1]{0}', space=sflag, size = 0x4, scoped, tag = 'scoped memory for attn_decoder_lstm_forward.1']
    #allocation18 [shape = 'u8[512]{0}', space=vmem, size = 0x400, scoped, tag = 'input window, operand 9, single buffered']
    #allocation19 [shape = 'u8[16384]{0}', space=vmem, size = 0x4000, scoped, tag = 'input window, operand 10, single buffered']
    #allocation20 [shape = 's32[1]{0}', space=sflag, size = 0x4, scoped, tag = 'scoped memory for attn_decoder_lstm_forward.1']
    #allocation21 [shape = 'u8[16384]{0}', space=vmem, size = 0x4000, scoped, tag = 'input window, operand 11, single buffered']
    #allocation22 [shape = 'u8[4096]{0}', space=vmem, size = 0x1000, scoped, tag = 'output window, operand 0, single buffered']
    #allocation23 [shape = 'u8[4096]{0}', space=vmem, size = 0x1000, scoped, tag = 'output window, operand 1, single buffered']
    #allocation24 [shape = 's32[1]{0}', space=sflag, size = 0x4, scoped, tag = 'scoped memory for attn_decoder_lstm_forward.1']
    #allocation25 [shape = 'u8[4096]{0}', space=vmem, size = 0x1000, scoped, tag = 'output window, operand 2, single buffered']
    #allocation26 [shape = 'u8[4096]{0}', space=vmem, size = 0x1000, scoped, tag = 'output window, operand 3, single buffered']
    #allocation27 [shape = 's32[1]{0}', space=sflag, size = 0x4, scoped, tag = 'scoped memory for attn_decoder_lstm_forward.1']
    %24 = vsyncpa [#allocation5], 0
    %25 = vsyncpa [#allocation8], 0
    %26 = vsyncpa [#allocation11], 0
    %27 = vsyncpa [#allocation14], 0
    %28 = vsyncpa [#allocation17], 0
    %29 = vsyncpa [#allocation20], 0
    %30 = vsyncpa [#allocation6], 0
    %31 = vsyncpa [#allocation24], 0
    %32 = vsyncpa [#allocation27], 0
    // Predicated region
    $region2: #{attn_decoder_lstm_forward.1} parent=1 // pred_check
      _
    $region3: #{attn_decoder_lstm_forward.1} parent=1 // pred_check_branch
      %34 = sbr.rel (0) target = $region5
    $region4: #{attn_decoder_lstm_forward.1} parent=1 // pred_region
      _
    $region5: #{attn_decoder_lstm_forward.1} parent=1 // pred_fallthru
      _
    // Predicated region
    $region6: #{attn_decoder_lstm_forward.1} parent=1 // pred_check
      _
    $region7: #{attn_decoder_lstm_forward.1} parent=1 // pred_check_branch
      %36 = sbr.rel (0) target = $region9
    $region8: #{attn_decoder_lstm_forward.1} parent=1 // pred_region
      %s38 = ssub.s32 128, 128
      %39 = vsyncadd [#allocation5], %s38
      %s41 = sshll.u32 [#allocation4], 4
      %s42 = int_to_ptr.vmem [resolvable:$true] %s41
      %44 = dma.hbm_to_vmem [thread:$0]  %s1, 128, %s42, [#allocation5]
    $region9: #{attn_decoder_lstm_forward.1} parent=1 // pred_fallthru
      _
    // Predicated region
    $region10: #{attn_decoder_lstm_forward.1} parent=1 // pred_check
      _
    $region11: #{attn_decoder_lstm_forward.1} parent=1 // pred_check_branch
      %46 = sbr.rel (0) target = $region13
    $region12: #{attn_decoder_lstm_forward.1} parent=1 // pred_region
      %s48 = ssub.s32 128, 128
      %49 = vsyncadd [#allocation8], %s48
      %s51 = sshll.u32 [#allocation7], 4
      %s52 = int_to_ptr.vmem [resolvable:$true] %s51
      %54 = dma.hbm_to_vmem [thread:$0]  %s2, 128, %s52, [#allocation8]
    $region13: #{attn_decoder_lstm_forward.1} parent=1 // pred_fallthru
      _
    // Predicated region
    $region14: #{attn_decoder_lstm_forward.1} parent=1 // pred_check
      _
    $region15: #{attn_decoder_lstm_forward.1} parent=1 // pred_check_branch
      %56 = sbr.rel (0) target = $region17
    $region16: #{attn_decoder_lstm_forward.1} parent=1 // pred_region
      %s58 = ssub.s32 128, 128
      %59 = vsyncadd [#allocation8], %s58
      %s61 = sshll.u32 [#allocation9], 4
      %s62 = int_to_ptr.vmem [resolvable:$true] %s61
      %64 = dma.hbm_to_vmem [thread:$0]  %s3, 128, %s62, [#allocation8]
    $region17: #{attn_decoder_lstm_forward.1} parent=1 // pred_fallthru
      _
    // Predicated region
    $region18: #{attn_decoder_lstm_forward.1} parent=1 // pred_check
      _
    $region19: #{attn_decoder_lstm_forward.1} parent=1 // pred_check_branch
      %66 = sbr.rel (0) target = $region21
    $region20: #{attn_decoder_lstm_forward.1} parent=1 // pred_region
      %s68 = ssub.s32 1024, 1024
      %69 = vsyncadd [#allocation11], %s68
      %s70 = sshll.u32 [#allocation10], 4
      %s71 = int_to_ptr.vmem [resolvable:$true] %s70
      %76 = dma.hbm_to_vmem [thread:$0]  %s4, 1024, %s71, [#allocation11], 128, 128, 8
    $region21: #{attn_decoder_lstm_forward.1} parent=1 // pred_fallthru
      _
    // Predicated region
    $region22: #{attn_decoder_lstm_forward.1} parent=1 // pred_check
      _
    $region23: #{attn_decoder_lstm_forward.1} parent=1 // pred_check_branch
      %78 = sbr.rel (0) target = $region25
    $region24: #{attn_decoder_lstm_forward.1} parent=1 // pred_region
      %s80 = ssub.s32 128, 128
      %81 = vsyncadd [#allocation11], %s80
      %s83 = sshll.u32 [#allocation12], 4
      %s84 = int_to_ptr.vmem [resolvable:$true] %s83
      %86 = dma.hbm_to_vmem [thread:$0]  %s5, 128, %s84, [#allocation11]
    $region25: #{attn_decoder_lstm_forward.1} parent=1 // pred_fallthru
      _
    // Predicated region
    $region26: #{attn_decoder_lstm_forward.1} parent=1 // pred_check
      _
    $region27: #{attn_decoder_lstm_forward.1} parent=1 // pred_check_branch
      %88 = sbr.rel (0) target = $region29
    $region28: #{attn_decoder_lstm_forward.1} parent=1 // pred_region
      %s90 = ssub.s32 128, 128
      %91 = vsyncadd [#allocation14], %s90
      %s93 = sshll.u32 [#allocation13], 4
      %s94 = int_to_ptr.vmem [resolvable:$true] %s93
      %96 = dma.hbm_to_vmem [thread:$0]  %s6, 128, %s94, [#allocation14]
    $region29: #{attn_decoder_lstm_forward.1} parent=1 // pred_fallthru
      _
    // Predicated region
    $region30: #{attn_decoder_lstm_forward.1} parent=1 // pred_check
      _
    $region31: #{attn_decoder_lstm_forward.1} parent=1 // pred_check_branch
      %98 = sbr.rel (0) target = $region33
    $region32: #{attn_decoder_lstm_forward.1} parent=1 // pred_region
      %s100 = ssub.s32 1024, 1024
      %101 = vsyncadd [#allocation14], %s100
      %s102 = sshll.u32 [#allocation15], 4
      %s103 = int_to_ptr.vmem [resolvable:$true] %s102
      %108 = dma.hbm_to_vmem [thread:$0]  %s7, 1024, %s103, [#allocation14], 128, 128, 8
    $region33: #{attn_decoder_lstm_forward.1} parent=1 // pred_fallthru
      _
    // Predicated region
    $region34: #{attn_decoder_lstm_forward.1} parent=1 // pred_check
      _
    $region35: #{attn_decoder_lstm_forward.1} parent=1 // pred_check_branch
      %110 = sbr.rel (0) target = $region37
    $region36: #{attn_decoder_lstm_forward.1} parent=1 // pred_region
      %s112 = ssub.s32 512, 512
      %113 = vsyncadd [#allocation17], %s112
      %s114 = sshll.u32 [#allocation16], 4
      %s115 = int_to_ptr.vmem [resolvable:$true] %s114
      %120 = dma.hbm_to_vmem [thread:$0]  %s8, 512, %s115, [#allocation17], 128, 128, 8
    $region37: #{attn_decoder_lstm_forward.1} parent=1 // pred_fallthru
      _
    // Predicated region
    $region38: #{attn_decoder_lstm_forward.1} parent=1 // pred_check
      _
    $region39: #{attn_decoder_lstm_forward.1} parent=1 // pred_check_branch
      %122 = sbr.rel (0) target = $region41
    $region40: #{attn_decoder_lstm_forward.1} parent=1 // pred_region
      %s124 = ssub.s32 16, 16
      %125 = vsyncadd [#allocation17], %s124
      %s127 = sshll.u32 [#allocation18], 4
      %s128 = int_to_ptr.vmem [resolvable:$true] %s127
      %130 = dma.hbm_to_vmem [thread:$0]  %s9, 16, %s128, [#allocation17]
    $region41: #{attn_decoder_lstm_forward.1} parent=1 // pred_fallthru
      _
    // Predicated region
    $region42: #{attn_decoder_lstm_forward.1} parent=1 // pred_check
      _
    $region43: #{attn_decoder_lstm_forward.1} parent=1 // pred_check_branch
      %132 = sbr.rel (0) target = $region45
    $region44: #{attn_decoder_lstm_forward.1} parent=1 // pred_region
      %s134 = ssub.s32 512, 512
      %135 = vsyncadd [#allocation20], %s134
      %s136 = sshll.u32 [#allocation19], 4
      %s137 = int_to_ptr.vmem [resolvable:$true] %s136
      %142 = dma.hbm_to_vmem [thread:$0]  %s10, 512, %s137, [#allocation20], 128, 128, 8
    $region45: #{attn_decoder_lstm_forward.1} parent=1 // pred_fallthru
      _
    // Predicated region
    $region46: #{attn_decoder_lstm_forward.1} parent=1 // pred_check
      _
    $region47: #{attn_decoder_lstm_forward.1} parent=1 // pred_check_branch
      %144 = sbr.rel (0) target = $region49
    $region48: #{attn_decoder_lstm_forward.1} parent=1 // pred_region
      %s146 = ssub.s32 512, 512
      %147 = vsyncadd [#allocation20], %s146
      %s148 = sshll.u32 [#allocation21], 4
      %s149 = int_to_ptr.vmem [resolvable:$true] %s148
      %154 = dma.hbm_to_vmem [thread:$0]  %s11, 512, %s149, [#allocation20], 128, 128, 8
    $region49: #{attn_decoder_lstm_forward.1} parent=1 // pred_fallthru
      _
    // Predicated region
    $region50: #{attn_decoder_lstm_forward.1} parent=1 // pred_check
      _
    $region51: #{attn_decoder_lstm_forward.1} parent=1 // pred_check_branch
      %156 = sbr.rel (0) target = $region53
    $region52: #{attn_decoder_lstm_forward.1} parent=1 // pred_region
      _
    $region53: #{attn_decoder_lstm_forward.1} parent=1 // pred_fallthru
      _
    // Predicated region
    $region54: #{attn_decoder_lstm_forward.1} parent=1 // pred_check
      _
    $region55: #{attn_decoder_lstm_forward.1} parent=1 // pred_check_branch
      %158 = sbr.rel (0) target = $region57
    $region56: #{attn_decoder_lstm_forward.1} parent=1 // pred_region
      _
    $region57: #{attn_decoder_lstm_forward.1} parent=1 // pred_fallthru
      _
    // Predicated region
    $region58: #{attn_decoder_lstm_forward.1} parent=1 // pred_check
      _
    $region59: #{attn_decoder_lstm_forward.1} parent=1 // pred_check_branch
      %160 = sbr.rel (0) target = $region61
    $region60: #{attn_decoder_lstm_forward.1} parent=1 // pred_region
      _
    $region61: #{attn_decoder_lstm_forward.1} parent=1 // pred_fallthru
      _
    // Predicated region
    $region62: #{attn_decoder_lstm_forward.1} parent=1 // pred_check
      _
    $region63: #{attn_decoder_lstm_forward.1} parent=1 // pred_check_branch
      %162 = sbr.rel (0) target = $region65
    $region64: #{attn_decoder_lstm_forward.1} parent=1 // pred_region
      %163 = dma.done [#allocation5], 128
    $region65: #{attn_decoder_lstm_forward.1} parent=1 // pred_fallthru
      _
    // Predicated region
    $region66: #{attn_decoder_lstm_forward.1} parent=1 // pred_check
      _
    $region67: #{attn_decoder_lstm_forward.1} parent=1 // pred_check_branch
      %165 = sbr.rel (0) target = $region69
    $region68: #{attn_decoder_lstm_forward.1} parent=1 // pred_region
      %166 = dma.done [#allocation8], 128
    $region69: #{attn_decoder_lstm_forward.1} parent=1 // pred_fallthru
      _
    // Predicated region
    $region70: #{attn_decoder_lstm_forward.1} parent=1 // pred_check
      _
    $region71: #{attn_decoder_lstm_forward.1} parent=1 // pred_check_branch
      %168 = sbr.rel (0) target = $region73
    $region72: #{attn_decoder_lstm_forward.1} parent=1 // pred_region
      %169 = dma.done [#allocation8], 128
    $region73: #{attn_decoder_lstm_forward.1} parent=1 // pred_fallthru
      _
    // Predicated region
    $region74: #{attn_decoder_lstm_forward.1} parent=1 // pred_check
      _
    $region75: #{attn_decoder_lstm_forward.1} parent=1 // pred_check_branch
      %171 = sbr.rel (0) target = $region77
    $region76: #{attn_decoder_lstm_forward.1} parent=1 // pred_region
      %172 = dma.done [#allocation11], 1024
    $region77: #{attn_decoder_lstm_forward.1} parent=1 // pred_fallthru
      _
    // Predicated region
    $region78: #{attn_decoder_lstm_forward.1} parent=1 // pred_check
      _
    $region79: #{attn_decoder_lstm_forward.1} parent=1 // pred_check_branch
      %174 = sbr.rel (0) target = $region81
    $region80: #{attn_decoder_lstm_forward.1} parent=1 // pred_region
      %175 = dma.done [#allocation11], 128
    $region81: #{attn_decoder_lstm_forward.1} parent=1 // pred_fallthru
      _
    // Predicated region
    $region82: #{attn_decoder_lstm_forward.1} parent=1 // pred_check
      _
    $region83: #{attn_decoder_lstm_forward.1} parent=1 // pred_check_branch
      %177 = sbr.rel (0) target = $region85
    $region84: #{attn_decoder_lstm_forward.1} parent=1 // pred_region
      %178 = dma.done [#allocation14], 128
    $region85: #{attn_decoder_lstm_forward.1} parent=1 // pred_fallthru
      _
    // Predicated region
    $region86: #{attn_decoder_lstm_forward.1} parent=1 // pred_check
      _
    $region87: #{attn_decoder_lstm_forward.1} parent=1 // pred_check_branch
      %180 = sbr.rel (0) target = $region89
    $region88: #{attn_decoder_lstm_forward.1} parent=1 // pred_region
      %181 = dma.done [#allocation14], 1024
    $region89: #{attn_decoder_lstm_forward.1} parent=1 // pred_fallthru
      _
    // Predicated region
    $region90: #{attn_decoder_lstm_forward.1} parent=1 // pred_check
      _
    $region91: #{attn_decoder_lstm_forward.1} parent=1 // pred_check_branch
      %183 = sbr.rel (0) target = $region93
    $region92: #{attn_decoder_lstm_forward.1} parent=1 // pred_region
      %184 = dma.done [#allocation17], 512
    $region93: #{attn_decoder_lstm_forward.1} parent=1 // pred_fallthru
      _
    // Predicated region
    $region94: #{attn_decoder_lstm_forward.1} parent=1 // pred_check
      _
    $region95: #{attn_decoder_lstm_forward.1} parent=1 // pred_check_branch
      %186 = sbr.rel (0) target = $region97
    $region96: #{attn_decoder_lstm_forward.1} parent=1 // pred_region
      %187 = dma.done [#allocation17], 16
    $region97: #{attn_decoder_lstm_forward.1} parent=1 // pred_fallthru
      _
    // Predicated region
    $region98: #{attn_decoder_lstm_forward.1} parent=1 // pred_check
      _
    $region99: #{attn_decoder_lstm_forward.1} parent=1 // pred_check_branch
      %189 = sbr.rel (0) target = $region101
    $region100: #{attn_decoder_lstm_forward.1} parent=1 // pred_region
      %190 = dma.done [#allocation20], 512
    $region101: #{attn_decoder_lstm_forward.1} parent=1 // pred_fallthru
      _
    // Predicated region
    $region102: #{attn_decoder_lstm_forward.1} parent=1 // pred_check
      _
    $region103: #{attn_decoder_lstm_forward.1} parent=1 // pred_check_branch
      %192 = sbr.rel (0) target = $region105
    $region104: #{attn_decoder_lstm_forward.1} parent=1 // pred_region
      %193 = dma.done [#allocation20], 512
    $region105: #{attn_decoder_lstm_forward.1} parent=1 // pred_fallthru
      _
    %p194 = scmp.eq.s32.totalorder 0, 0
    // Predicated region
    $region106: #{attn_decoder_lstm_forward.1} parent=1 // pred_check
      %p195 = pneg %p194
    $region107: #{attn_decoder_lstm_forward.1} parent=1 // pred_check_branch
      %197 = sbr.rel (%p195) target = $region109
    $region108: #{attn_decoder_lstm_forward.1} parent=1 // pred_region
      %v198 = vld [vmem:[#allocation7] sm:$0xff]
      %vm199 = vcmask 261120
      %200 = vst.msk [vmem:[#allocation2] sm:$0xff] %vm199, %v198
      %v201 = vld [vmem:[#allocation9] sm:$0xff]
      %202 = vst.msk [vmem:[#allocation3] sm:$0xff] %vm199, %v201
    $region109: #{attn_decoder_lstm_forward.1} parent=1 // pred_fallthru
      _
    %v203 = vld [vmem:[#allocation2] sm:$0xff]
    %v204 = vld [vmem:[#allocation3] sm:$0xff]
    %v205 = vld [vmem:[%s0] sm:$0xff]
    %v206 = vlaneseq
    %v207 = vand.u32 %v206, 127
    %208 = vset.pattern.permute.xlu0 0
    %209 = vperm.xlu0 %208, %v205
    %v210 = vpop.permute.xlu0 %209
    %vm211 = vcmp.eq.s32.totalorder %v210, %v207
    %v212 = vsel %vm211, 1, 0
    %v213 = vcvt.s32.f32 %v212
    %v214 = vld [vmem:[#allocation4] sm:$0xff]
    %v215 = vld [vmem:[#allocation13] sm:$0x3f]
    %v216 = vld [vmem:[#allocation15] sm:$0xff]
    %v217 = vld [vmem:[#allocation15 + $0x8] sm:$0xff]
    %v218 = vld [vmem:[#allocation15 + $0x10] sm:$0xff]
    %v219 = vld [vmem:[#allocation15 + $0x18] sm:$0xff]
    %v220 = vld [vmem:[#allocation15 + $0x20] sm:$0xff]
    %v221 = vld [vmem:[#allocation15 + $0x28] sm:$0xff]
    %v222 = vld [vmem:[#allocation15 + $0x30] sm:$0xff]
    %v223 = vld [vmem:[#allocation15 + $0x38] sm:$0xff]
    %vm224 = vcmask 523264
    %v226 = vsel %vm224, %v214, 0
    %228 = vmatprep.subr.mxu0 0.0
    %229 = vmatpush1.msra.mxu0 %v216
    %230 = vmatprep.subr.mxu0 0.0
    %231 = vmatpush1.msra.mxu0 %v217
    %232 = vmatprep.subr.mxu0 0.0
    %233 = vmatpush1.msra.mxu0 %v218
    %234 = vmatprep.subr.mxu0 0.0
    %235 = vmatpush1.msra.mxu0 %v219
    %236 = vmatprep.subr.mxu0 0.0
    %237 = vmatpush1.msra.mxu0 %v220
    %238 = vmatprep.subr.mxu0 0.0
    %239 = vmatpush1.msra.mxu0 %v221
    %240 = vmatprep.subr.mxu0 0.0
    %241 = vmatpush1.msra.mxu0 %v222
    %242 = vmatprep.subr.mxu0 0.0
    %243 = vmatpush1.msra.mxu0 %v223
    %244 = vmatprep.subr.mxu0 0.0
    %245 = vmatpush1.msra.mxu0 0.0
    %246 = vmatprep.subr.mxu0 0.0
    %247 = vmatpush1.msra.mxu0 0.0
    %248 = vmatprep.subr.mxu0 0.0
    %249 = vmatpush1.msra.mxu0 0.0
    %250 = vmatprep.subr.mxu0 0.0
    %251 = vmatpush1.msra.mxu0 0.0
    %252 = vmatprep.subr.mxu0 0.0
    %253 = vmatpush1.msra.mxu0 0.0
    %254 = vmatprep.subr.mxu0 0.0
    %255 = vmatpush1.msra.mxu0 0.0
    %256 = vmatprep.subr.mxu0 0.0
    %257 = vmatpush1.msra.mxu0 0.0
    %258 = vmatprep.subr.mxu0 0.0
    %259 = vmatpush1.msra.mxu0 0.0
    %260 = vmatprep.subr.mxu0 0.0
    %261 = vmatpush1.msra.mxu0 0.0
    %262 = vmatprep.subr.mxu0 0.0
    %263 = vmatpush1.msra.mxu0 0.0
    %264 = vmatprep.subr.mxu0 0.0
    %265 = vmatpush1.msra.mxu0 0.0
    %266 = vmatprep.subr.mxu0 0.0
    %267 = vmatpush1.msra.mxu0 0.0
    %268 = vmatprep.subr.mxu0 0.0
    %269 = vmatpush1.msra.mxu0 0.0
    %270 = vmatprep.subr.mxu0 0.0
    %271 = vmatpush1.msra.mxu0 0.0
    %272 = vmatprep.subr.mxu0 0.0
    %273 = vmatpush1.msra.mxu0 0.0
    %274 = vmatprep.subr.mxu0 0.0
    %275 = vmatpush1.msra.mxu0 0.0
    %276 = vmatprep.subr.mxu0 0.0
    %277 = vmatpush1.msra.mxu0 0.0
    %278 = vmatprep.subr.mxu0 0.0
    %279 = vmatpush1.msra.mxu0 0.0
    %280 = vmatprep.subr.mxu0 0.0
    %281 = vmatpush1.msra.mxu0 0.0
    %282 = vmatprep.subr.mxu0 0.0
    %283 = vmatpush1.msra.mxu0 0.0
    %284 = vmatprep.subr.mxu0 0.0
    %285 = vmatpush1.msra.mxu0 0.0
    %286 = vmatprep.subr.mxu0 0.0
    %287 = vmatpush1.msra.mxu0 0.0
    %288 = vmatprep.subr.mxu0 0.0
    %289 = vmatpush1.msra.mxu0 0.0
    %290 = vmatprep.subr.mxu0 0.0
    %291 = vmatpush1.msra.mxu0 0.0
    %292 = vmatprep.mubr.f32.mxu0 0.0
    %293 = vmatmul.mubr.f32.gmra.mrb[0].mxu0 %v226
    %v294 = vpop.f32.mrb[0].mxu0
    %v295 = vadd.f32 0.0, %v294
    %v296 = vpop.f32.mrb[0].mxu0
    %297 = vdwg.mxu0
    %vm298 = vcmask 48128
    %v300 = vsel %vm298, %v213, 0
    %vm302 = vcmask 1045504
    %v304 = vsel %vm302, %v215, 0
    %306 = vmatprep.subr.mxu0 0.0
    %307 = vmatpush1.msra.mxu0 %v304
    %308 = vmatprep.subr.mxu0 0.0
    %309 = vmatpush1.msra.mxu0 0.0
    %310 = vmatprep.subr.mxu0 0.0
    %311 = vmatpush1.msra.mxu0 0.0
    %312 = vmatprep.subr.mxu0 0.0
    %313 = vmatpush1.msra.mxu0 0.0
    %314 = vmatprep.subr.mxu0 0.0
    %315 = vmatpush1.msra.mxu0 0.0
    %316 = vmatprep.subr.mxu0 0.0
    %317 = vmatpush1.msra.mxu0 0.0
    %318 = vmatprep.subr.mxu0 0.0
    %319 = vmatpush1.msra.mxu0 0.0
    %320 = vmatprep.subr.mxu0 0.0
    %321 = vmatpush1.msra.mxu0 0.0
    %322 = vmatprep.subr.mxu0 0.0
    %323 = vmatpush1.msra.mxu0 0.0
    %324 = vmatprep.subr.mxu0 0.0
    %325 = vmatpush1.msra.mxu0 0.0
    %326 = vmatprep.subr.mxu0 0.0
    %327 = vmatpush1.msra.mxu0 0.0
    %328 = vmatprep.subr.mxu0 0.0
    %329 = vmatpush1.msra.mxu0 0.0
    %330 = vmatprep.subr.mxu0 0.0
    %331 = vmatpush1.msra.mxu0 0.0
    %332 = vmatprep.subr.mxu0 0.0
    %333 = vmatpush1.msra.mxu0 0.0
    %334 = vmatprep.subr.mxu0 0.0
    %335 = vmatpush1.msra.mxu0 0.0
    %336 = vmatprep.subr.mxu0 0.0
    %337 = vmatpush1.msra.mxu0 0.0
    %338 = vmatprep.subr.mxu0 0.0
    %339 = vmatpush1.msra.mxu0 0.0
    %340 = vmatprep.subr.mxu0 0.0
    %341 = vmatpush1.msra.mxu0 0.0
    %342 = vmatprep.subr.mxu0 0.0
    %343 = vmatpush1.msra.mxu0 0.0
    %344 = vmatprep.subr.mxu0 0.0
    %345 = vmatpush1.msra.mxu0 0.0
    %346 = vmatprep.subr.mxu0 0.0
    %347 = vmatpush1.msra.mxu0 0.0
    %348 = vmatprep.subr.mxu0 0.0
    %349 = vmatpush1.msra.mxu0 0.0
    %350 = vmatprep.subr.mxu0 0.0
    %351 = vmatpush1.msra.mxu0 0.0
    %352 = vmatprep.subr.mxu0 0.0
    %353 = vmatpush1.msra.mxu0 0.0
    %354 = vmatprep.subr.mxu0 0.0
    %355 = vmatpush1.msra.mxu0 0.0
    %356 = vmatprep.subr.mxu0 0.0
    %357 = vmatpush1.msra.mxu0 0.0
    %358 = vmatprep.subr.mxu0 0.0
    %359 = vmatpush1.msra.mxu0 0.0
    %360 = vmatprep.subr.mxu0 0.0
    %361 = vmatpush1.msra.mxu0 0.0
    %362 = vmatprep.subr.mxu0 0.0
    %363 = vmatpush1.msra.mxu0 0.0
    %364 = vmatprep.subr.mxu0 0.0
    %365 = vmatpush1.msra.mxu0 0.0
    %366 = vmatprep.subr.mxu0 0.0
    %367 = vmatpush1.msra.mxu0 0.0
    %368 = vmatprep.subr.mxu0 0.0
    %369 = vmatpush1.msra.mxu0 0.0
    %370 = vmatprep.mubr.f32.mxu0 0.0
    %371 = vmatmul.mubr.f32.gmra.mrb[0].mxu0 %v300
    %v372 = vpop.f32.mrb[0].mxu0
    %v373 = vadd.f32 %v295, %v372
    %v374 = vpop.f32.mrb[0].mxu0
    %375 = vdwg.mxu0
    %v376 = vld [vmem:[#allocation16] sm:$0xff]
    %v377 = vld [vmem:[#allocation16 + $0x8] sm:$0xff]
    %v378 = vld [vmem:[#allocation16 + $0x10] sm:$0xff]
    %v379 = vld [vmem:[#allocation16 + $0x18] sm:$0xff]
    %vm380 = vcmask 261120
    %v382 = vsel %vm380, %v203, 0
    %384 = vmatprep.subr.mxu0 0.0
    %385 = vmatpush1.msra.mxu0 %v376
    %386 = vmatprep.subr.mxu0 0.0
    %387 = vmatpush1.msra.mxu0 %v377
    %388 = vmatprep.subr.mxu0 0.0
    %389 = vmatpush1.msra.mxu0 %v378
    %390 = vmatprep.subr.mxu0 0.0
    %391 = vmatpush1.msra.mxu0 %v379
    %392 = vmatprep.subr.mxu0 0.0
    %393 = vmatpush1.msra.mxu0 0.0
    %394 = vmatprep.subr.mxu0 0.0
    %395 = vmatpush1.msra.mxu0 0.0
    %396 = vmatprep.subr.mxu0 0.0
    %397 = vmatpush1.msra.mxu0 0.0
    %398 = vmatprep.subr.mxu0 0.0
    %399 = vmatpush1.msra.mxu0 0.0
    %400 = vmatprep.subr.mxu0 0.0
    %401 = vmatpush1.msra.mxu0 0.0
    %402 = vmatprep.subr.mxu0 0.0
    %403 = vmatpush1.msra.mxu0 0.0
    %404 = vmatprep.subr.mxu0 0.0
    %405 = vmatpush1.msra.mxu0 0.0
    %406 = vmatprep.subr.mxu0 0.0
    %407 = vmatpush1.msra.mxu0 0.0
    %408 = vmatprep.subr.mxu0 0.0
    %409 = vmatpush1.msra.mxu0 0.0
    %410 = vmatprep.subr.mxu0 0.0
    %411 = vmatpush1.msra.mxu0 0.0
    %412 = vmatprep.subr.mxu0 0.0
    %413 = vmatpush1.msra.mxu0 0.0
    %414 = vmatprep.subr.mxu0 0.0
    %415 = vmatpush1.msra.mxu0 0.0
    %416 = vmatprep.subr.mxu0 0.0
    %417 = vmatpush1.msra.mxu0 0.0
    %418 = vmatprep.subr.mxu0 0.0
    %419 = vmatpush1.msra.mxu0 0.0
    %420 = vmatprep.subr.mxu0 0.0
    %421 = vmatpush1.msra.mxu0 0.0
    %422 = vmatprep.subr.mxu0 0.0
    %423 = vmatpush1.msra.mxu0 0.0
    %424 = vmatprep.subr.mxu0 0.0
    %425 = vmatpush1.msra.mxu0 0.0
    %426 = vmatprep.subr.mxu0 0.0
    %427 = vmatpush1.msra.mxu0 0.0
    %428 = vmatprep.subr.mxu0 0.0
    %429 = vmatpush1.msra.mxu0 0.0
    %430 = vmatprep.subr.mxu0 0.0
    %431 = vmatpush1.msra.mxu0 0.0
    %432 = vmatprep.subr.mxu0 0.0
    %433 = vmatpush1.msra.mxu0 0.0
    %434 = vmatprep.subr.mxu0 0.0
    %435 = vmatpush1.msra.mxu0 0.0
    %436 = vmatprep.subr.mxu0 0.0
    %437 = vmatpush1.msra.mxu0 0.0
    %438 = vmatprep.subr.mxu0 0.0
    %439 = vmatpush1.msra.mxu0 0.0
    %440 = vmatprep.subr.mxu0 0.0
    %441 = vmatpush1.msra.mxu0 0.0
    %442 = vmatprep.subr.mxu0 0.0
    %443 = vmatpush1.msra.mxu0 0.0
    %444 = vmatprep.subr.mxu0 0.0
    %445 = vmatpush1.msra.mxu0 0.0
    %446 = vmatprep.subr.mxu0 0.0
    %447 = vmatpush1.msra.mxu0 0.0
    %448 = vmatprep.mubr.f32.mxu0 0.0
    %449 = vmatmul.mubr.f32.gmra.mrb[0].mxu0 %v382
    %v450 = vpop.f32.mrb[0].mxu0
    %v451 = vadd.f32 0.0, %v450
    %v452 = vpop.f32.mrb[0].mxu0
    %453 = vdwg.mxu0
    %v454 = vadd.f32 %v373, %v451
    %v455 = vld [vmem:[#allocation18] sm:$0x1]
    %v457 = vlaneseq
    %v458 = vshrl.u32 %v457, 7
    %v459 = vsub.s32 0, %v458
    %v460 = vrot.slane %v455, %v459
    %v462 = vadd.f32 %v454, %v460
    %v463 = vxor.u32 %v462, 2147483648
    %v464 = vmul.f32 %v463, 1.442695
    %v465 = vpow.pop %v464
    %v466 = vadd.f32 %v465, 1.0
    %v467 = vrcp.pop %v466
    %v468 = vmul.f32 1.0, %v467
    %v469 = vtanh.pop %v462
    %471 = vrot.lane.b32.xlu0 %v204, 32
    %v472 = vpop.permute.xlu0 %471
    %v474 = vmul.f32 %v468, %v472
    %476 = vrot.lane.b32.xlu0 %v469, 64
    %v477 = vpop.permute.xlu0 %476
    %v479 = vmul.f32 %v468, %v477
    %481 = vrot.lane.b32.xlu0 %v479, 32
    %v482 = vpop.permute.xlu0 %481
    %v484 = vadd.f32 %v474, %v482
    %v485 = vtanh.pop %v484
    %487 = vrot.lane.b32.xlu0 %v485, 64
    %v488 = vpop.permute.xlu0 %487
    %v490 = vmul.f32 %v468, %v488
    %492 = vrot.lane.b32.xlu0 %v490, 32
    %v493 = vpop.permute.xlu0 %492
    %495 = vst.msk [vmem:[#allocation2] sm:$0xff] %vm380, %v493
    %497 = vrot.lane.b32.xlu0 %v484, 96
    %v498 = vpop.permute.xlu0 %497
    %500 = vst.msk [vmem:[#allocation3] sm:$0xff] %vm380, %v498
    %v501 = vld [vmem:[#allocation19] sm:$0xff]
    %v502 = vld [vmem:[#allocation19 + $0x8] sm:$0xff]
    %v503 = vld [vmem:[#allocation19 + $0x10] sm:$0xff]
    %v504 = vld [vmem:[#allocation19 + $0x18] sm:$0xff]
    %v505 = vsel %vm380, %v493, 0
    %507 = vmatprep.subr.mxu0 0.0
    %508 = vmatpush1.msra.mxu0 %v501
    %509 = vmatprep.subr.mxu0 0.0
    %510 = vmatpush1.msra.mxu0 %v502
    %511 = vmatprep.subr.mxu0 0.0
    %512 = vmatpush1.msra.mxu0 %v503
    %513 = vmatprep.subr.mxu0 0.0
    %514 = vmatpush1.msra.mxu0 %v504
    %515 = vmatprep.subr.mxu0 0.0
    %516 = vmatpush1.msra.mxu0 0.0
    %517 = vmatprep.subr.mxu0 0.0
    %518 = vmatpush1.msra.mxu0 0.0
    %519 = vmatprep.subr.mxu0 0.0
    %520 = vmatpush1.msra.mxu0 0.0
    %521 = vmatprep.subr.mxu0 0.0
    %522 = vmatpush1.msra.mxu0 0.0
    %523 = vmatprep.subr.mxu0 0.0
    %524 = vmatpush1.msra.mxu0 0.0
    %525 = vmatprep.subr.mxu0 0.0
    %526 = vmatpush1.msra.mxu0 0.0
    %527 = vmatprep.subr.mxu0 0.0
    %528 = vmatpush1.msra.mxu0 0.0
    %529 = vmatprep.subr.mxu0 0.0
    %530 = vmatpush1.msra.mxu0 0.0
    %531 = vmatprep.subr.mxu0 0.0
    %532 = vmatpush1.msra.mxu0 0.0
    %533 = vmatprep.subr.mxu0 0.0
    %534 = vmatpush1.msra.mxu0 0.0
    %535 = vmatprep.subr.mxu0 0.0
    %536 = vmatpush1.msra.mxu0 0.0
    %537 = vmatprep.subr.mxu0 0.0
    %538 = vmatpush1.msra.mxu0 0.0
    %539 = vmatprep.subr.mxu0 0.0
    %540 = vmatpush1.msra.mxu0 0.0
    %541 = vmatprep.subr.mxu0 0.0
    %542 = vmatpush1.msra.mxu0 0.0
    %543 = vmatprep.subr.mxu0 0.0
    %544 = vmatpush1.msra.mxu0 0.0
    %545 = vmatprep.subr.mxu0 0.0
    %546 = vmatpush1.msra.mxu0 0.0
    %547 = vmatprep.subr.mxu0 0.0
    %548 = vmatpush1.msra.mxu0 0.0
    %549 = vmatprep.subr.mxu0 0.0
    %550 = vmatpush1.msra.mxu0 0.0
    %551 = vmatprep.subr.mxu0 0.0
    %552 = vmatpush1.msra.mxu0 0.0
    %553 = vmatprep.subr.mxu0 0.0
    %554 = vmatpush1.msra.mxu0 0.0
    %555 = vmatprep.subr.mxu0 0.0
    %556 = vmatpush1.msra.mxu0 0.0
    %557 = vmatprep.subr.mxu0 0.0
    %558 = vmatpush1.msra.mxu0 0.0
    %559 = vmatprep.subr.mxu0 0.0
    %560 = vmatpush1.msra.mxu0 0.0
    %561 = vmatprep.subr.mxu0 0.0
    %562 = vmatpush1.msra.mxu0 0.0
    %563 = vmatprep.subr.mxu0 0.0
    %564 = vmatpush1.msra.mxu0 0.0
    %565 = vmatprep.subr.mxu0 0.0
    %566 = vmatpush1.msra.mxu0 0.0
    %567 = vmatprep.subr.mxu0 0.0
    %568 = vmatpush1.msra.mxu0 0.0
    %569 = vmatprep.subr.mxu0 0.0
    %570 = vmatpush1.msra.mxu0 0.0
    %571 = vmatprep.mubr.f32.mxu0 0.0
    %572 = vmatmul.mubr.f32.gmra.mrb[0].mxu0 %v505
    %v573 = vpop.f32.mrb[0].mxu0
    %v574 = vadd.f32 0.0, %v573
    %v575 = vpop.f32.mrb[0].mxu0
    %576 = vdwg.mxu0
    %v577 = vld [vmem:[#allocation10] sm:$0xff]
    %v578 = vld [vmem:[#allocation10 + $0x8] sm:$0xff]
    %v579 = vld [vmem:[#allocation10 + $0x10] sm:$0xff]
    %v580 = vld [vmem:[#allocation10 + $0x18] sm:$0xff]
    %v581 = vld [vmem:[#allocation10 + $0x20] sm:$0xff]
    %v582 = vld [vmem:[#allocation10 + $0x28] sm:$0xff]
    %v583 = vld [vmem:[#allocation10 + $0x30] sm:$0xff]
    %v584 = vld [vmem:[#allocation10 + $0x38] sm:$0xff]
    %v586 = vcombine.high %v574, %v574
    %v588 = vunpack.c.l.s4 1966171168
    %v589 = vunpack.c.0.s8 %v588
    %v590 = vlaneseq
    %v591 = vshrl.u32 %v590, 7
    %v592 = vsub.s32 %v589, %v591
    %v593 = vrot.slane %v574, %v592
    %v595 = vunpack.c.l.s4 1966171168
    %v596 = vunpack.c.0.s8 %v595
    %v597 = vlaneseq
    %v598 = vshrl.u32 %v597, 7
    %v599 = vsub.s32 %v596, %v598
    %v600 = vrot.slane %v586, %v599
    %v601 = vcombine.high %v593, %v593
    %v602 = vcombine.high %v600, %v600
    %v604 = vunpack.c.l.s4 1966171168
    %v605 = vunpack.c.0.s8 %v604
    %v606 = vlaneseq
    %v607 = vshrl.u32 %v606, 7
    %v608 = vsub.s32 %v605, %v607
    %v609 = vrot.slane %v593, %v608
    %v611 = vunpack.c.l.s4 1966171168
    %v612 = vunpack.c.0.s8 %v611
    %v613 = vlaneseq
    %v614 = vshrl.u32 %v613, 7
    %v615 = vsub.s32 %v612, %v614
    %v616 = vrot.slane %v600, %v615
    %v618 = vunpack.c.l.s4 1966171168
    %v619 = vunpack.c.0.s8 %v618
    %v620 = vlaneseq
    %v621 = vshrl.u32 %v620, 7
    %v622 = vsub.s32 %v619, %v621
    %v623 = vrot.slane %v601, %v622
    %v625 = vunpack.c.l.s4 1966171168
    %v626 = vunpack.c.0.s8 %v625
    %v627 = vlaneseq
    %v628 = vshrl.u32 %v627, 7
    %v629 = vsub.s32 %v626, %v628
    %v630 = vrot.slane %v602, %v629
    %v631 = vcombine.high %v609, %v609
    %v632 = vcombine.high %v616, %v616
    %v633 = vcombine.high %v623, %v623
    %v634 = vcombine.high %v630, %v630
    %v635 = vlaneseq
    %v636 = vshrl.u32 %v635, 7
    %v637 = vsub.s32 0, %v636
    %v638 = vrot.slane %v609, %v637
    %v639 = vlaneseq
    %v640 = vshrl.u32 %v639, 7
    %v641 = vsub.s32 0, %v640
    %v642 = vrot.slane %v623, %v641
    %v643 = vlaneseq
    %v644 = vshrl.u32 %v643, 7
    %v645 = vsub.s32 0, %v644
    %v646 = vrot.slane %v631, %v645
    %v647 = vlaneseq
    %v648 = vshrl.u32 %v647, 7
    %v649 = vsub.s32 0, %v648
    %v650 = vrot.slane %v633, %v649
    %v651 = vlaneseq
    %v652 = vshrl.u32 %v651, 7
    %v653 = vsub.s32 0, %v652
    %v654 = vrot.slane %v616, %v653
    %v655 = vlaneseq
    %v656 = vshrl.u32 %v655, 7
    %v657 = vsub.s32 0, %v656
    %v658 = vrot.slane %v630, %v657
    %v659 = vlaneseq
    %v660 = vshrl.u32 %v659, 7
    %v661 = vsub.s32 0, %v660
    %v662 = vrot.slane %v632, %v661
    %v663 = vlaneseq
    %v664 = vshrl.u32 %v663, 7
    %v665 = vsub.s32 0, %v664
    %v666 = vrot.slane %v634, %v665
    %v675 = vmul.f32 %v577, %v638
    %v676 = vmul.f32 %v578, %v642
    %v677 = vmul.f32 %v579, %v646
    %v678 = vmul.f32 %v580, %v650
    %v679 = vmul.f32 %v581, %v654
    %v680 = vmul.f32 %v582, %v658
    %v681 = vmul.f32 %v583, %v662
    %v682 = vmul.f32 %v584, %v666
    %v683 = vsel %vm380, %v675, 0.0
    %684 = vadd.xlane.f32.xlu0 %v683
    %v685 = vpop.xlane.xlu0 %684
    %v686 = vsel %vm380, %v676, 0.0
    %687 = vadd.xlane.f32.xlu0 %v686
    %v688 = vpop.xlane.xlu0 %687
    %v689 = vsel %vm380, %v677, 0.0
    %690 = vadd.xlane.f32.xlu0 %v689
    %v691 = vpop.xlane.xlu0 %690
    %v692 = vsel %vm380, %v678, 0.0
    %693 = vadd.xlane.f32.xlu0 %v692
    %v694 = vpop.xlane.xlu0 %693
    %v695 = vsel %vm380, %v679, 0.0
    %696 = vadd.xlane.f32.xlu0 %v695
    %v697 = vpop.xlane.xlu0 %696
    %v698 = vsel %vm380, %v680, 0.0
    %699 = vadd.xlane.f32.xlu0 %v698
    %v700 = vpop.xlane.xlu0 %699
    %v701 = vsel %vm380, %v681, 0.0
    %702 = vadd.xlane.f32.xlu0 %v701
    %v703 = vpop.xlane.xlu0 %702
    %v704 = vsel %vm380, %v682, 0.0
    %705 = vadd.xlane.f32.xlu0 %v704
    %v706 = vpop.xlane.xlu0 %705
    %v707 = vld [vmem:[#allocation12] sm:$0xff]
    %vm708 = vcmp.gt.f32.partialorder %v707, 0.0
    %v717 = vlaneseq
    %v718 = vshrl.u32 %v717, 7
    %v719 = vsub.s32 %v207, %v718
    %v720 = vrot.slane %v685, %v719
    %v721 = vlaneseq
    %v722 = vshrl.u32 %v721, 7
    %v723 = vsub.s32 %v207, %v722
    %v724 = vrot.slane %v688, %v723
    %v725 = vlaneseq
    %v726 = vshrl.u32 %v725, 7
    %v727 = vsub.s32 %v207, %v726
    %v728 = vrot.slane %v691, %v727
    %v729 = vlaneseq
    %v730 = vshrl.u32 %v729, 7
    %v731 = vsub.s32 %v207, %v730
    %v732 = vrot.slane %v694, %v731
    %v733 = vlaneseq
    %v734 = vshrl.u32 %v733, 7
    %v735 = vsub.s32 %v207, %v734
    %v736 = vrot.slane %v697, %v735
    %v737 = vlaneseq
    %v738 = vshrl.u32 %v737, 7
    %v739 = vsub.s32 %v207, %v738
    %v740 = vrot.slane %v700, %v739
    %v741 = vlaneseq
    %v742 = vshrl.u32 %v741, 7
    %v743 = vsub.s32 %v207, %v742
    %v744 = vrot.slane %v703, %v743
    %v745 = vlaneseq
    %v746 = vshrl.u32 %v745, 7
    %v747 = vsub.s32 %v207, %v746
    %v748 = vrot.slane %v706, %v747
    %vm749 = vcmask 1041409
    %v750 = vsel %vm749, %v724, %v720
    %vm751 = vcmask 1042434
    %v752 = vsel %vm751, %v728, %v750
    %vm753 = vcmask 1043459
    %v754 = vsel %vm753, %v732, %v752
    %vm755 = vcmask 1044484
    %v756 = vsel %vm755, %v736, %v754
    %vm757 = vcmask 1045509
    %v758 = vsel %vm757, %v740, %v756
    %vm759 = vcmask 1046534
    %v760 = vsel %vm759, %v744, %v758
    %vm761 = vcmask 1047559
    %v762 = vsel %vm761, %v748, %v760
    %v764 = vsel %vm708, -1e+30, %v762
    %vm765 = vcmask 64512
    %v766 = vsel %vm765, %v764, -inf
    %767 = vmax.xlane.f32.xlu0 %v766
    %v768 = vpop.xlane.xlu0 %767
    %v769 = vsub.f32 %v764, %v768
    %v770 = vmul.f32 %v769, 1.442695
    %v771 = vpow.pop %v770
    %v772 = vsel %vm765, %v771, 0.0
    %773 = vadd.xlane.f32.xlu0 %v772
    %v774 = vpop.xlane.xlu0 %773
    %v775 = vrcp.pop %v774
    %v776 = vmul.f32 %v771, %v775
    %v777 = vlaneseq
    %v778 = vshrl.u32 %v777, 7
    %v779 = vsub.s32 0, %v778
    %v780 = vrot.slane %v776, %v779
    %782 = vbcast.lane.b32.xlu0 %v780, 256
    %v783 = vpop.permute.xlu0 %782
    %v784 = vlaneseq
    %v785 = vshrl.u32 %v784, 7
    %v786 = vsub.s32 1, %v785
    %v787 = vrot.slane %v776, %v786
    %789 = vbcast.lane.b32.xlu0 %v787, 256
    %v790 = vpop.permute.xlu0 %789
    %v791 = vlaneseq
    %v792 = vshrl.u32 %v791, 7
    %v793 = vsub.s32 2, %v792
    %v794 = vrot.slane %v776, %v793
    %796 = vbcast.lane.b32.xlu0 %v794, 256
    %v797 = vpop.permute.xlu0 %796
    %v798 = vlaneseq
    %v799 = vshrl.u32 %v798, 7
    %v800 = vsub.s32 3, %v799
    %v801 = vrot.slane %v776, %v800
    %803 = vbcast.lane.b32.xlu0 %v801, 256
    %v804 = vpop.permute.xlu0 %803
    %v805 = vlaneseq
    %v806 = vshrl.u32 %v805, 7
    %v807 = vsub.s32 4, %v806
    %v808 = vrot.slane %v776, %v807
    %810 = vbcast.lane.b32.xlu0 %v808, 256
    %v811 = vpop.permute.xlu0 %810
    %v812 = vlaneseq
    %v813 = vshrl.u32 %v812, 7
    %v814 = vsub.s32 5, %v813
    %v815 = vrot.slane %v776, %v814
    %817 = vbcast.lane.b32.xlu0 %v815, 256
    %v818 = vpop.permute.xlu0 %817
    %v819 = vlaneseq
    %v820 = vshrl.u32 %v819, 7
    %v821 = vsub.s32 6, %v820
    %v822 = vrot.slane %v776, %v821
    %824 = vbcast.lane.b32.xlu0 %v822, 256
    %v825 = vpop.permute.xlu0 %824
    %v826 = vlaneseq
    %v827 = vshrl.u32 %v826, 7
    %v828 = vsub.s32 7, %v827
    %v829 = vrot.slane %v776, %v828
    %831 = vbcast.lane.b32.xlu0 %v829, 256
    %v832 = vpop.permute.xlu0 %831
    %v833 = vmul.f32 %v577, %v783
    %v834 = vmul.f32 %v578, %v790
    %v835 = vmul.f32 %v579, %v797
    %v836 = vmul.f32 %v580, %v804
    %v837 = vmul.f32 %v581, %v811
    %v838 = vmul.f32 %v582, %v818
    %v839 = vmul.f32 %v583, %v825
    %v840 = vmul.f32 %v584, %v832
    %v841 = vsel %vm380, %v833, 0.0
    %v842 = vrot.slane %v841, 4
    %v843 = vadd.f32 %v841, %v842
    %v844 = vrot.slane %v843, 2
    %v845 = vadd.f32 %v843, %v844
    %v846 = vrot.slane %v845, 1
    %v847 = vadd.f32 %v845, %v846
    %v848 = vsel %vm380, %v834, 0.0
    %v849 = vrot.slane %v848, 4
    %v850 = vadd.f32 %v848, %v849
    %v851 = vrot.slane %v850, 2
    %v852 = vadd.f32 %v850, %v851
    %v853 = vrot.slane %v852, 1
    %v854 = vadd.f32 %v852, %v853
    %v855 = vsel %vm380, %v835, 0.0
    %v856 = vrot.slane %v855, 4
    %v857 = vadd.f32 %v855, %v856
    %v858 = vrot.slane %v857, 2
    %v859 = vadd.f32 %v857, %v858
    %v860 = vrot.slane %v859, 1
    %v861 = vadd.f32 %v859, %v860
    %v862 = vsel %vm380, %v836, 0.0
    %v863 = vrot.slane %v862, 4
    %v864 = vadd.f32 %v862, %v863
    %v865 = vrot.slane %v864, 2
    %v866 = vadd.f32 %v864, %v865
    %v867 = vrot.slane %v866, 1
    %v868 = vadd.f32 %v866, %v867
    %v869 = vsel %vm380, %v837, 0.0
    %v870 = vrot.slane %v869, 4
    %v871 = vadd.f32 %v869, %v870
    %v872 = vrot.slane %v871, 2
    %v873 = vadd.f32 %v871, %v872
    %v874 = vrot.slane %v873, 1
    %v875 = vadd.f32 %v873, %v874
    %v876 = vsel %vm380, %v838, 0.0
    %v877 = vrot.slane %v876, 4
    %v878 = vadd.f32 %v876, %v877
    %v879 = vrot.slane %v878, 2
    %v880 = vadd.f32 %v878, %v879
    %v881 = vrot.slane %v880, 1
    %v882 = vadd.f32 %v880, %v881
    %v883 = vsel %vm380, %v839, 0.0
    %v884 = vrot.slane %v883, 4
    %v885 = vadd.f32 %v883, %v884
    %v886 = vrot.slane %v885, 2
    %v887 = vadd.f32 %v885, %v886
    %v888 = vrot.slane %v887, 1
    %v889 = vadd.f32 %v887, %v888
    %v890 = vsel %vm380, %v840, 0.0
    %v891 = vrot.slane %v890, 4
    %v892 = vadd.f32 %v890, %v891
    %v893 = vrot.slane %v892, 2
    %v894 = vadd.f32 %v892, %v893
    %v895 = vrot.slane %v894, 1
    %v896 = vadd.f32 %v894, %v895
    %v897 = vld [vmem:[#allocation21] sm:$0xff]
    %v898 = vld [vmem:[#allocation21 + $0x8] sm:$0xff]
    %v899 = vld [vmem:[#allocation21 + $0x10] sm:$0xff]
    %v900 = vld [vmem:[#allocation21 + $0x18] sm:$0xff]
    %v901 = vld [vmem:[%s12] sm:$0xff]
    %v902 = vld [vmem:[%s12 + $0x8] sm:$0xff]
    %v903 = vld [vmem:[%s12 + $0x10] sm:$0xff]
    %v904 = vld [vmem:[%s12 + $0x18] sm:$0xff]
    %905 = vmatprep.subr.mxu0 0.0
    %906 = vmatpush1.msra.mxu0 %v901
    %907 = vmatprep.subr.mxu0 0.0
    %908 = vmatpush1.msra.mxu0 %v902
    %909 = vmatprep.subr.mxu0 0.0
    %910 = vmatpush1.msra.mxu0 %v903
    %911 = vmatprep.subr.mxu0 0.0
    %912 = vmatpush1.msra.mxu0 %v904
    %913 = vmatprep.subr.mxu0 0.0
    %914 = vmatpush1.msra.mxu0 0.0
    %915 = vmatprep.subr.mxu0 0.0
    %916 = vmatpush1.msra.mxu0 0.0
    %917 = vmatprep.subr.mxu0 0.0
    %918 = vmatpush1.msra.mxu0 0.0
    %919 = vmatprep.subr.mxu0 0.0
    %920 = vmatpush1.msra.mxu0 0.0
    %921 = vmatprep.subr.mxu0 0.0
    %922 = vmatpush1.msra.mxu0 0.0
    %923 = vmatprep.subr.mxu0 0.0
    %924 = vmatpush1.msra.mxu0 0.0
    %925 = vmatprep.subr.mxu0 0.0
    %926 = vmatpush1.msra.mxu0 0.0
    %927 = vmatprep.subr.mxu0 0.0
    %928 = vmatpush1.msra.mxu0 0.0
    %929 = vmatprep.subr.mxu0 0.0
    %930 = vmatpush1.msra.mxu0 0.0
    %931 = vmatprep.subr.mxu0 0.0
    %932 = vmatpush1.msra.mxu0 0.0
    %933 = vmatprep.subr.mxu0 0.0
    %934 = vmatpush1.msra.mxu0 0.0
    %935 = vmatprep.subr.mxu0 0.0
    %936 = vmatpush1.msra.mxu0 0.0
    %937 = vmatprep.subr.mxu0 0.0
    %938 = vmatpush1.msra.mxu0 0.0
    %939 = vmatprep.subr.mxu0 0.0
    %940 = vmatpush1.msra.mxu0 0.0
    %941 = vmatprep.subr.mxu0 0.0
    %942 = vmatpush1.msra.mxu0 0.0
    %943 = vmatprep.subr.mxu0 0.0
    %944 = vmatpush1.msra.mxu0 0.0
    %945 = vmatprep.subr.mxu0 0.0
    %946 = vmatpush1.msra.mxu0 0.0
    %947 = vmatprep.subr.mxu0 0.0
    %948 = vmatpush1.msra.mxu0 0.0
    %949 = vmatprep.subr.mxu0 0.0
    %950 = vmatpush1.msra.mxu0 0.0
    %951 = vmatprep.subr.mxu0 0.0
    %952 = vmatpush1.msra.mxu0 0.0
    %953 = vmatprep.subr.mxu0 0.0
    %954 = vmatpush1.msra.mxu0 0.0
    %955 = vmatprep.subr.mxu0 0.0
    %956 = vmatpush1.msra.mxu0 0.0
    %957 = vmatprep.subr.mxu0 0.0
    %958 = vmatpush1.msra.mxu0 0.0
    %959 = vmatprep.subr.mxu0 0.0
    %960 = vmatpush1.msra.mxu0 0.0
    %961 = vmatprep.subr.mxu0 0.0
    %962 = vmatpush1.msra.mxu0 0.0
    %963 = vmatprep.subr.mxu0 0.0
    %964 = vmatpush1.msra.mxu0 0.0
    %965 = vmatprep.subr.mxu0 0.0
    %966 = vmatpush1.msra.mxu0 0.0
    %967 = vmatprep.subr.mxu0 0.0
    %968 = vmatpush1.msra.mxu0 0.0
    %969 = vmatprep.mubr.f32.mxu0 0.0
    %970 = vmatmul.mubr.f32.gmra.mrb[0].mxu0 %v505
    %v971 = vpop.f32.mrb[0].mxu0
    %v972 = vadd.f32 0.0, %v971
    %v973 = vpop.f32.mrb[0].mxu0
    %974 = vdwg.mxu0
    %v983 = vsel %vm749, %v854, %v847
    %v984 = vsel %vm751, %v861, %v983
    %v985 = vsel %vm753, %v868, %v984
    %v986 = vsel %vm755, %v875, %v985
    %v987 = vsel %vm757, %v882, %v986
    %v988 = vsel %vm759, %v889, %v987
    %v989 = vsel %vm761, %v896, %v988
    %v990 = vsel %vm380, %v989, 0
    %992 = vmatprep.subr.mxu0 0.0
    %993 = vmatpush1.msra.mxu0 %v897
    %994 = vmatprep.subr.mxu0 0.0
    %995 = vmatpush1.msra.mxu0 %v898
    %996 = vmatprep.subr.mxu0 0.0
    %997 = vmatpush1.msra.mxu0 %v899
    %998 = vmatprep.subr.mxu0 0.0
    %999 = vmatpush1.msra.mxu0 %v900
    %1000 = vmatprep.subr.mxu0 0.0
    %1001 = vmatpush1.msra.mxu0 0.0
    %1002 = vmatprep.subr.mxu0 0.0
    %1003 = vmatpush1.msra.mxu0 0.0
    %1004 = vmatprep.subr.mxu0 0.0
    %1005 = vmatpush1.msra.mxu0 0.0
    %1006 = vmatprep.subr.mxu0 0.0
    %1007 = vmatpush1.msra.mxu0 0.0
    %1008 = vmatprep.subr.mxu0 0.0
    %1009 = vmatpush1.msra.mxu0 0.0
    %1010 = vmatprep.subr.mxu0 0.0
    %1011 = vmatpush1.msra.mxu0 0.0
    %1012 = vmatprep.subr.mxu0 0.0
    %1013 = vmatpush1.msra.mxu0 0.0
    %1014 = vmatprep.subr.mxu0 0.0
    %1015 = vmatpush1.msra.mxu0 0.0
    %1016 = vmatprep.subr.mxu0 0.0
    %1017 = vmatpush1.msra.mxu0 0.0
    %1018 = vmatprep.subr.mxu0 0.0
    %1019 = vmatpush1.msra.mxu0 0.0
    %1020 = vmatprep.subr.mxu0 0.0
    %1021 = vmatpush1.msra.mxu0 0.0
    %1022 = vmatprep.subr.mxu0 0.0
    %1023 = vmatpush1.msra.mxu0 0.0
    %1024 = vmatprep.subr.mxu0 0.0
    %1025 = vmatpush1.msra.mxu0 0.0
    %1026 = vmatprep.subr.mxu0 0.0
    %1027 = vmatpush1.msra.mxu0 0.0
    %1028 = vmatprep.subr.mxu0 0.0
    %1029 = vmatpush1.msra.mxu0 0.0
    %1030 = vmatprep.subr.mxu0 0.0
    %1031 = vmatpush1.msra.mxu0 0.0
    %1032 = vmatprep.subr.mxu0 0.0
    %1033 = vmatpush1.msra.mxu0 0.0
    %1034 = vmatprep.subr.mxu0 0.0
    %1035 = vmatpush1.msra.mxu0 0.0
    %1036 = vmatprep.subr.mxu0 0.0
    %1037 = vmatpush1.msra.mxu0 0.0
    %1038 = vmatprep.subr.mxu0 0.0
    %1039 = vmatpush1.msra.mxu0 0.0
    %1040 = vmatprep.subr.mxu0 0.0
    %1041 = vmatpush1.msra.mxu0 0.0
    %1042 = vmatprep.subr.mxu0 0.0
    %1043 = vmatpush1.msra.mxu0 0.0
    %1044 = vmatprep.subr.mxu0 0.0
    %1045 = vmatpush1.msra.mxu0 0.0
    %1046 = vmatprep.subr.mxu0 0.0
    %1047 = vmatpush1.msra.mxu0 0.0
    %1048 = vmatprep.subr.mxu0 0.0
    %1049 = vmatpush1.msra.mxu0 0.0
    %1050 = vmatprep.subr.mxu0 0.0
    %1051 = vmatpush1.msra.mxu0 0.0
    %1052 = vmatprep.subr.mxu0 0.0
    %1053 = vmatpush1.msra.mxu0 0.0
    %1054 = vmatprep.subr.mxu0 0.0
    %1055 = vmatpush1.msra.mxu0 0.0
    %1056 = vmatprep.mubr.f32.mxu0 0.0
    %1057 = vmatmul.mubr.f32.gmra.mrb[0].mxu0 %v990
    %v1058 = vpop.f32.mrb[0].mxu0
    %v1059 = vadd.f32 %v972, %v1058
    %v1060 = vpop.f32.mrb[0].mxu0
    %1061 = vdwg.mxu0
    %v1062 = vtanh.pop %v1059
    %v1063 = vld [vmem:[%s13] sm:$0xff]
    %v1064 = vld [vmem:[%s13 + $0x8] sm:$0xff]
    %v1065 = vld [vmem:[%s13 + $0x10] sm:$0xff]
    %v1066 = vld [vmem:[%s13 + $0x18] sm:$0xff]
    %v1067 = vld [vmem:[%s14] sm:$0x1]
    %v1069 = vlaneseq
    %v1070 = vshrl.u32 %v1069, 7
    %v1071 = vsub.s32 0, %v1070
    %v1072 = vrot.slane %v1067, %v1071
    %v1075 = vsel %vm380, %v1062, 0
    %1077 = vmatprep.subr.mxu0 0.0
    %1078 = vmatpush1.msra.mxu0 %v1063
    %1079 = vmatprep.subr.mxu0 0.0
    %1080 = vmatpush1.msra.mxu0 %v1064
    %1081 = vmatprep.subr.mxu0 0.0
    %1082 = vmatpush1.msra.mxu0 %v1065
    %1083 = vmatprep.subr.mxu0 0.0
    %1084 = vmatpush1.msra.mxu0 %v1066
    %1085 = vmatprep.subr.mxu0 0.0
    %1086 = vmatpush1.msra.mxu0 0.0
    %1087 = vmatprep.subr.mxu0 0.0
    %1088 = vmatpush1.msra.mxu0 0.0
    %1089 = vmatprep.subr.mxu0 0.0
    %1090 = vmatpush1.msra.mxu0 0.0
    %1091 = vmatprep.subr.mxu0 0.0
    %1092 = vmatpush1.msra.mxu0 0.0
    %1093 = vmatprep.subr.mxu0 0.0
    %1094 = vmatpush1.msra.mxu0 0.0
    %1095 = vmatprep.subr.mxu0 0.0
    %1096 = vmatpush1.msra.mxu0 0.0
    %1097 = vmatprep.subr.mxu0 0.0
    %1098 = vmatpush1.msra.mxu0 0.0
    %1099 = vmatprep.subr.mxu0 0.0
    %1100 = vmatpush1.msra.mxu0 0.0
    %1101 = vmatprep.subr.mxu0 0.0
    %1102 = vmatpush1.msra.mxu0 0.0
    %1103 = vmatprep.subr.mxu0 0.0
    %1104 = vmatpush1.msra.mxu0 0.0
    %1105 = vmatprep.subr.mxu0 0.0
    %1106 = vmatpush1.msra.mxu0 0.0
    %1107 = vmatprep.subr.mxu0 0.0
    %1108 = vmatpush1.msra.mxu0 0.0
    %1109 = vmatprep.subr.mxu0 0.0
    %1110 = vmatpush1.msra.mxu0 0.0
    %1111 = vmatprep.subr.mxu0 0.0
    %1112 = vmatpush1.msra.mxu0 0.0
    %1113 = vmatprep.subr.mxu0 0.0
    %1114 = vmatpush1.msra.mxu0 0.0
    %1115 = vmatprep.subr.mxu0 0.0
    %1116 = vmatpush1.msra.mxu0 0.0
    %1117 = vmatprep.subr.mxu0 0.0
    %1118 = vmatpush1.msra.mxu0 0.0
    %1119 = vmatprep.subr.mxu0 0.0
    %1120 = vmatpush1.msra.mxu0 0.0
    %1121 = vmatprep.subr.mxu0 0.0
    %1122 = vmatpush1.msra.mxu0 0.0
    %1123 = vmatprep.subr.mxu0 0.0
    %1124 = vmatpush1.msra.mxu0 0.0
    %1125 = vmatprep.subr.mxu0 0.0
    %1126 = vmatpush1.msra.mxu0 0.0
    %1127 = vmatprep.subr.mxu0 0.0
    %1128 = vmatpush1.msra.mxu0 0.0
    %1129 = vmatprep.subr.mxu0 0.0
    %1130 = vmatpush1.msra.mxu0 0.0
    %1131 = vmatprep.subr.mxu0 0.0
    %1132 = vmatpush1.msra.mxu0 0.0
    %1133 = vmatprep.subr.mxu0 0.0
    %1134 = vmatpush1.msra.mxu0 0.0
    %1135 = vmatprep.subr.mxu0 0.0
    %1136 = vmatpush1.msra.mxu0 0.0
    %1137 = vmatprep.subr.mxu0 0.0
    %1138 = vmatpush1.msra.mxu0 0.0
    %1139 = vmatprep.subr.mxu0 0.0
    %1140 = vmatpush1.msra.mxu0 0.0
    %1141 = vmatprep.mubr.f32.mxu0 0.0
    %1142 = vmatmul.mubr.f32.gmra.mrb[0].mxu0 %v1075
    %v1143 = vpop.f32.mrb[0].mxu0
    %v1144 = vadd.f32 %v1072, %v1143
    %v1145 = vpop.f32.mrb[0].mxu0
    %1146 = vdwg.mxu0
    %1147 = vst.msk [vmem:[#allocation22] sm:$0xff] %vm380, %v493
    %1148 = vst.msk [vmem:[#allocation23] sm:$0xff] %vm380, %v498
    %1149 = vst.msk [vmem:[#allocation25] sm:$0xff] %vm765, %v776
    %1150 = vst.msk [vmem:[#allocation26] sm:$0xff] %vm298, %v1144
    // Predicated region
    $region110: #{attn_decoder_lstm_forward.1} parent=1 // pred_check
      _
    $region111: #{attn_decoder_lstm_forward.1} parent=1 // pred_check_branch
      %1152 = sbr.rel (0) target = $region113
    $region112: #{attn_decoder_lstm_forward.1} parent=1 // pred_region
      %s1154 = ssub.s32 128, 128
      %1155 = vsyncadd [#allocation6], %s1154
      %s1157 = sshll.u32 [#allocation22], 4
      %s1158 = int_to_ptr.vmem [resolvable:$true] %s1157
      %1160 = dma.vmem_to_hbm [thread:$0]  %s1158, 128, %s15, [#allocation6]
    $region113: #{attn_decoder_lstm_forward.1} parent=1 // pred_fallthru
      _
    // Predicated region
    $region114: #{attn_decoder_lstm_forward.1} parent=1 // pred_check
      _
    $region115: #{attn_decoder_lstm_forward.1} parent=1 // pred_check_branch
      %1162 = sbr.rel (0) target = $region117
    $region116: #{attn_decoder_lstm_forward.1} parent=1 // pred_region
      %s1164 = ssub.s32 128, 128
      %1165 = vsyncadd [#allocation24], %s1164
      %s1167 = sshll.u32 [#allocation23], 4
      %s1168 = int_to_ptr.vmem [resolvable:$true] %s1167
      %1170 = dma.vmem_to_hbm [thread:$0]  %s1168, 128, %s16, [#allocation24]
    $region117: #{attn_decoder_lstm_forward.1} parent=1 // pred_fallthru
      _
    // Predicated region
    $region118: #{attn_decoder_lstm_forward.1} parent=1 // pred_check
      _
    $region119: #{attn_decoder_lstm_forward.1} parent=1 // pred_check_branch
      %1172 = sbr.rel (0) target = $region121
    $region120: #{attn_decoder_lstm_forward.1} parent=1 // pred_region
      %s1174 = ssub.s32 128, 128
      %1175 = vsyncadd [#allocation24], %s1174
      %s1177 = sshll.u32 [#allocation25], 4
      %s1178 = int_to_ptr.vmem [resolvable:$true] %s1177
      %1180 = dma.vmem_to_hbm [thread:$0]  %s1178, 128, %s17, [#allocation24]
    $region121: #{attn_decoder_lstm_forward.1} parent=1 // pred_fallthru
      _
    // Predicated region
    $region122: #{attn_decoder_lstm_forward.1} parent=1 // pred_check
      _
    $region123: #{attn_decoder_lstm_forward.1} parent=1 // pred_check_branch
      %1182 = sbr.rel (0) target = $region125
    $region124: #{attn_decoder_lstm_forward.1} parent=1 // pred_region
      %s1184 = ssub.s32 128, 128
      %1185 = vsyncadd [#allocation27], %s1184
      %s1187 = sshll.u32 [#allocation26], 4
      %s1188 = int_to_ptr.vmem [resolvable:$true] %s1187
      %1190 = dma.vmem_to_hbm [thread:$0]  %s1188, 128, %s18, [#allocation27]
    $region125: #{attn_decoder_lstm_forward.1} parent=1 // pred_fallthru
      _
    // Predicated region
    $region126: #{attn_decoder_lstm_forward.1} parent=1 // pred_check
      _
    $region127: #{attn_decoder_lstm_forward.1} parent=1 // pred_check_branch
      %1192 = sbr.rel (0) target = $region129
    $region128: #{attn_decoder_lstm_forward.1} parent=1 // pred_region
      %1193 = dma.done [#allocation6], 128
    $region129: #{attn_decoder_lstm_forward.1} parent=1 // pred_fallthru
      _
    // Predicated region
    $region130: #{attn_decoder_lstm_forward.1} parent=1 // pred_check
      _
    $region131: #{attn_decoder_lstm_forward.1} parent=1 // pred_check_branch
      %1195 = sbr.rel (0) target = $region133
    $region132: #{attn_decoder_lstm_forward.1} parent=1 // pred_region
      %1196 = dma.done [#allocation24], 128
    $region133: #{attn_decoder_lstm_forward.1} parent=1 // pred_fallthru
      _
    // Predicated region
    $region134: #{attn_decoder_lstm_forward.1} parent=1 // pred_check
      _
    $region135: #{attn_decoder_lstm_forward.1} parent=1 // pred_check_branch
      %1198 = sbr.rel (0) target = $region137
    $region136: #{attn_decoder_lstm_forward.1} parent=1 // pred_region
      %1199 = dma.done [#allocation24], 128
    $region137: #{attn_decoder_lstm_forward.1} parent=1 // pred_fallthru
      _
    // Predicated region
    $region138: #{attn_decoder_lstm_forward.1} parent=1 // pred_check
      _
    $region139: #{attn_decoder_lstm_forward.1} parent=1 // pred_check_branch
      %1201 = sbr.rel (0) target = $region141
    $region140: #{attn_decoder_lstm_forward.1} parent=1 // pred_region
      %1202 = dma.done [#allocation27], 128
    $region141: #{attn_decoder_lstm_forward.1} parent=1 // pred_fallthru
      _
    %1203 = vsyncpa [#allocation5], 1
    %1204 = vsyncpa [#allocation8], 1
    %1205 = vsyncpa [#allocation11], 1
    %1206 = vsyncpa [#allocation14], 1
    %1207 = vsyncpa [#allocation17], 1
    %1208 = vsyncpa [#allocation20], 1
    %1209 = vsyncpa [#allocation6], 1
    %1210 = vsyncpa [#allocation24], 1
    %1211 = vsyncpa [#allocation27], 1

</llo_original>
